<compile_context>
chip_gen: v5e
topology: v5e:2x2
jax: 0.10.0
libtpu: 0.0.40
codegen_flags: <defaults>
</compile_context>

<pallas_src>
import functools

import jax
import jax.numpy as jnp
from jax import lax
from jax.experimental import pallas as pl
from jax.experimental.pallas import tpu as pltpu

BN_EPS = 1e-5

# 2-D dot_general dimension numbers: NN = canonical (M,K)x(K,N),
# NT = rhs transposed, TN = lhs transposed (same forms used by the TPU
# flash-attention Pallas kernels).
NN = (((1,), (0,)), ((), ()))
NT = (((1,), (1,)), ((), ()))
TN = (((0,), (0,)), ((), ()))


# ------------------------------ fused kernel ---------------------------------

def _bottleneck_kernel(x_ref, w1_ref, w2_ref, w3_ref, b1_ref, b2_ref, b3_ref,
                       o_ref, pad_ref, *, H, W, w_off):
    """Fused Bottleneck (stride=1, identity residual) for one sample.

    x_ref  : (1, Cin, H*W)      channels-first, spatial flattened onto lanes
    w1_ref : (Cin, planes)      conv1 weight, BN1 scale folded in
    w2_ref : (9, planes, planes) conv2 taps, (co, ci) per tap, BN2 scale folded
    w3_ref : (Cout, planes)     conv3 weight transposed, BN3 scale folded in
    b1_ref : (1, planes)        folded BN1 bias (broadcast over H*W rows)
    b2_ref : (planes, 1)        folded BN2 bias (broadcast over H*W lanes)
    b3_ref : (Cout, 1)          folded BN3 bias (broadcast over H*W lanes)
    o_ref  : (1, Cout, H*W)
    pad_ref: VMEM scratch (H+2, W + 2*w_off, planes) for the zero-padded
             conv2 input, kept channels-minor for clean spatial slicing.
    """
    planes = w1_ref.shape[1]
    hw = H * W

    x_cf = x_ref[0]                                          # (Cin, H*W)

    # ---- conv1 (1x1) + bn1 + relu ---------------------------------------
    # TN: contract over Cin -> (H*W, planes), channels-minor for the 3x3 stage.
    h1 = lax.dot_general(x_cf, w1_ref[...], TN,
                         preferred_element_type=jnp.float32)
    h1 = jnp.maximum(h1 + b1_ref[...], 0.0)                  # (H*W, planes)

    # ---- conv2 (3x3, stride=1, pad=1) + bn2 + relu ------------------------
    # padding=1 done inside VMEM: zero the scratch once, store the interior at
    # a tile-aligned sublane offset (w_off % 8 == 0), read 9 shifted windows.
    pad_ref[...] = jnp.zeros_like(pad_ref)
    pad_ref[1:H + 1, w_off:w_off + W, :] = h1.reshape(H, W, planes)

    acc = jnp.zeros((planes, hw), jnp.float32)               # channels-first
    for tap in range(9):                                     # static unroll
        kh, kw = tap // 3, tap % 3
        c0 = w_off - 1 + kw
        patch = pad_ref[kh:kh + H, c0:c0 + W, :].reshape(hw, planes)
        # NT: (planes, planes) x (H*W, planes)^T -> (planes, H*W)
        acc = acc + lax.dot_general(w2_ref[tap], patch, NT,
                                    preferred_element_type=jnp.float32)
    h2 = jnp.maximum(acc + b2_ref[...], 0.0)                 # (planes, H*W)

    # ---- conv3 (1x1) + bn3 + residual + relu ------------------------------
    h3 = lax.dot_general(w3_ref[...], h2, NN,
                         preferred_element_type=jnp.float32)  # (Cout, H*W)
    o_ref[0] = jnp.maximum(h3 + b3_ref[...] + x_cf, 0.0)     # lane-dense store


# -------------------------------- wrapper ------------------------------------

def _fold_bn(bn):
    gamma, beta, mean, var = bn
    scale = gamma / jnp.sqrt(var + BN_EPS)
    return scale, beta - mean * scale


@jax.jit
def bottleneck_forward(x_nchw, params):
    """Bottleneck.forward with stride=1, downsample=None (module defaults)."""
    # TODO(synk): stride>1 / downsample branch not implemented (defaults used).
    N, Cin, H, W = x_nchw.shape
    planes = params['w1'].shape[1]
    Cout = params['w3'].shape[1]
    assert Cout == Cin, "identity residual requires inplanes == planes * 4"

    s1, b1 = _fold_bn(params['bn1'])
    s2, b2 = _fold_bn(params['bn2'])
    s3, b3 = _fold_bn(params['bn3'])

    # Fold BN scales into conv weights; pre-orient for the in-kernel matmuls.
    w1 = (params['w1'] * s1[None, :]).astype(jnp.float32)              # (Cin, P)
    w2 = params['w2'] * s2[None, None, None, :]                        # (3,3,Ci,Co)
    w2t = jnp.transpose(w2, (0, 1, 3, 2)).reshape(9, planes, planes)   # (9, Co, Ci)
    w3t = (params['w3'] * s3[None, :]).T.astype(jnp.float32)           # (Cout, P)

    b1r = b1.reshape(1, planes).astype(jnp.float32)
    b2c = b2.reshape(planes, 1).astype(jnp.float32)
    b3c = b3.reshape(Cout, 1).astype(jnp.float32)

    # Layout-preserving reshape only (no HBM transpose): NCHW -> (N, C, H*W).
    x3 = x_nchw.reshape(N, Cin, H * W).astype(jnp.float32)

    w_off = 8   # tile-aligned sublane offset of the padded interior
    kernel = functools.partial(_bottleneck_kernel, H=H, W=W, w_off=w_off)

    out = pl.pallas_call(
        kernel,
        out_shape=jax.ShapeDtypeStruct((N, Cout, H * W), jnp.float32),
        grid=(N,),
        in_specs=[
            pl.BlockSpec((1, Cin, H * W), lambda n: (n, 0, 0)),
            pl.BlockSpec((Cin, planes), lambda n: (0, 0)),
            pl.BlockSpec((9, planes, planes), lambda n: (0, 0, 0)),
            pl.BlockSpec((Cout, planes), lambda n: (0, 0)),
            pl.BlockSpec((1, planes), lambda n: (0, 0)),
            pl.BlockSpec((planes, 1), lambda n: (0, 0)),
            pl.BlockSpec((Cout, 1), lambda n: (0, 0)),
        ],
        out_specs=pl.BlockSpec((1, Cout, H * W), lambda n: (n, 0, 0)),
        scratch_shapes=[pltpu.VMEM((H + 2, W + 2 * w_off, planes), jnp.float32)],
        compiler_params=pltpu.CompilerParams(
            dimension_semantics=("parallel",)),
    )(x3, w1, w2t, w3t, b1r, b2c, b3c)

    return out.reshape(N, Cout, H, W)                        # free reshape


# --------------------------- pure-JAX reference -------------------------------

def bottleneck_reference(x_nchw, params):
    x = jnp.transpose(x_nchw, (0, 2, 3, 1)).astype(jnp.float32)

    def bn(y, p):
        g, b, m, v = p
        return g * (y - m) / jnp.sqrt(v + BN_EPS) + b

    out = jnp.einsum('nhwc,cd->nhwd', x, params['w1'])
    out = jax.nn.relu(bn(out, params['bn1']))
    out = jax.lax.conv_general_dilated(out, params['w2'], (1, 1), 'SAME',
                                       dimension_numbers=('NHWC', 'HWIO', 'NHWC'))
    out = jax.nn.relu(bn(out, params['bn2']))
    out = jnp.einsum('nhwc,cd->nhwd', out, params['w3'])
    out = jax.nn.relu(bn(out, params['bn3']) + x)
    return jnp.transpose(out, (0, 3, 1, 2))


# ----------------------------------- main -------------------------------------

if __name__ == "__main__":
    inplanes, planes = 16, 4          # expansion=4 -> out channels 16 (identity residual)
    N, H, W = 2, 16, 16

    key = jax.random.PRNGKey(0)
    k = jax.random.split(key, 4)
    # x is NCHW to match the PyTorch module's input convention.
    x = jax.random.normal(k[0], (N, inplanes, H, W), jnp.float32)

    # Deterministic synthetic weights (conv weights stored channels-last / HWIO).
    w1 = 0.1 * jax.random.normal(k[1], (inplanes, planes), jnp.float32)          # 1x1
    w2 = 0.1 * jax.random.normal(k[2], (3, 3, planes, planes), jnp.float32)      # 3x3 HWIO
    w3 = 0.1 * jax.random.normal(k[3], (planes, planes * 4), jnp.float32)        # 1x1

    def bn_params(c, off):
        i = jnp.arange(c, dtype=jnp.float32)
        gamma = 1.0 + 0.01 * i
        beta = 0.02 * i - 0.01 * off
        mean = 0.05 * jnp.sin(i + off)
        var = 1.0 + 0.1 * jnp.cos(i) ** 2
        return gamma, beta, mean, var

    params = dict(
        w1=w1, w2=w2, w3=w3,
        bn1=bn_params(planes, 0.0),
        bn2=bn_params(planes, 1.0),
        bn3=bn_params(planes * 4, 2.0),
    )

    out = bottleneck_forward(x, params)
    out = jax.block_until_ready(out)

    ref = bottleneck_reference(x, params)
    assert out.shape == (N, inplanes, H, W)
    assert jnp.allclose(out, ref, atol=1e-4, rtol=1e-4), \
        float(jnp.max(jnp.abs(out - ref)))

    print("KERNEL_OK")
</pallas_src>

<mosaic_0001>
module attributes {stable_mosaic.version = 11 : i64} {
  func.func @_bottleneck_kernel(%arg0: i32, %arg1: memref<1x16x256xf32, #tpu.memory_space<vmem>>, %arg2: memref<16x4xf32, #tpu.memory_space<vmem>>, %arg3: memref<9x4x4xf32, #tpu.memory_space<vmem>>, %arg4: memref<16x4xf32, #tpu.memory_space<vmem>>, %arg5: memref<1x4xf32, #tpu.memory_space<vmem>>, %arg6: memref<4x1xf32, #tpu.memory_space<vmem>>, %arg7: memref<16x1xf32, #tpu.memory_space<vmem>>, %arg8: memref<1x16x256xf32, #tpu.memory_space<vmem>>, %arg9: memref<18x32x4xf32, #tpu.memory_space<vmem>>) attributes {dimension_semantics = [#tpu.dimension_semantics<parallel>], iteration_bounds = array<i64: 2>, scalar_prefetch = 0 : i64, scratch_operands = 1 : i64, tpu.core_type = #tpu.core_type<tc>, window_params = [{transform_indices = @transform_0, window_bounds = array<i64: 1, 16, 256>}, {pipeline_mode = #tpu.pipeline_mode<synchronous>, transform_indices = @transform_1, window_bounds = array<i64: 16, 4>}, {pipeline_mode = #tpu.pipeline_mode<synchronous>, transform_indices = @transform_2, window_bounds = array<i64: 9, 4, 4>}, {pipeline_mode = #tpu.pipeline_mode<synchronous>, transform_indices = @transform_3, window_bounds = array<i64: 16, 4>}, {pipeline_mode = #tpu.pipeline_mode<synchronous>, transform_indices = @transform_4, window_bounds = array<i64: 1, 4>}, {pipeline_mode = #tpu.pipeline_mode<synchronous>, transform_indices = @transform_5, window_bounds = array<i64: 4, 1>}, {pipeline_mode = #tpu.pipeline_mode<synchronous>, transform_indices = @transform_6, window_bounds = array<i64: 16, 1>}, {transform_indices = @transform_7, window_bounds = array<i64: 1, 16, 256>}]} {
    %c0 = arith.constant 0 : index
    %c0_0 = arith.constant 0 : index
    %c0_1 = arith.constant 0 : index
    %0 = vector.load %arg1[%c0, %c0_0, %c0_1] : memref<1x16x256xf32, #tpu.memory_space<vmem>>, vector<1x16x256xf32>
    %1 = vector.shape_cast %0 : vector<1x16x256xf32> to vector<16x256xf32>
    %c0_2 = arith.constant 0 : index
    %c0_3 = arith.constant 0 : index
    %2 = vector.load %arg2[%c0_2, %c0_3] : memref<16x4xf32, #tpu.memory_space<vmem>>, vector<16x4xf32>
    %cst = arith.constant dense<0.000000e+00> : vector<256x4xf32>
    %3 = tpu.matmul %1, %2, %cst {dimension_numbers = #tpu.dot_dimension_numbers<[0], [0], [1], [1], [0, 1, 1, 1], [], []>} : vector<16x256xf32>, vector<16x4xf32>, vector<256x4xf32> -> vector<256x4xf32>
    %c0_4 = arith.constant 0 : index
    %c0_5 = arith.constant 0 : index
    %4 = vector.load %arg5[%c0_4, %c0_5] : memref<1x4xf32, #tpu.memory_space<vmem>>, vector<1x4xf32>
    %5 = vector.broadcast %4 : vector<1x4xf32> to vector<256x4xf32>
    %6 = arith.addf %3, %5 : vector<256x4xf32>
    %cst_6 = arith.constant 0.000000e+00 : f32
    %7 = vector.broadcast %cst_6 : f32 to vector<256x4xf32>
    %8 = arith.maximumf %6, %7 : vector<256x4xf32>
    %cst_7 = arith.constant 0.000000e+00 : f32
    %9 = vector.broadcast %cst_7 : f32 to vector<18x32x4xf32>
    %c0_8 = arith.constant 0 : index
    %c0_9 = arith.constant 0 : index
    %c0_10 = arith.constant 0 : index
    %10 = vector.load %arg9[%c0_8, %c0_9, %c0_10] : memref<18x32x4xf32, #tpu.memory_space<vmem>>, vector<18x32x4xf32>
    tpu.vector_store %arg9[%c0_8, %c0_9, %c0_10], %9 {strides = array<i32>} : memref<18x32x4xf32, #tpu.memory_space<vmem>>, vector<18x32x4xf32>,
    %11 = vector.shape_cast %8 : vector<256x4xf32> to vector<16x16x4xf32>
    %c1 = arith.constant 1 : index
    %c8 = arith.constant 8 : index
    %c0_11 = arith.constant 0 : index
    %12 = vector.load %arg9[%c1, %c8, %c0_11] : memref<18x32x4xf32, #tpu.memory_space<vmem>>, vector<16x16x4xf32>
    tpu.vector_store %arg9[%c1, %c8, %c0_11], %11 {strides = array<i32>} : memref<18x32x4xf32, #tpu.memory_space<vmem>>, vector<16x16x4xf32>,
    %cst_12 = arith.constant 0.000000e+00 : f32
    %13 = vector.broadcast %cst_12 : f32 to vector<4x256xf32>
    %c0_13 = arith.constant 0 : index
    %c7 = arith.constant 7 : index
    %c0_14 = arith.constant 0 : index
    %14 = vector.load %arg9[%c0_13, %c7, %c0_14] : memref<18x32x4xf32, #tpu.memory_space<vmem>>, vector<16x16x4xf32>
    %15 = vector.shape_cast %14 : vector<16x16x4xf32> to vector<256x4xf32>
    %c0_15 = arith.constant 0 : index
    %c0_16 = arith.constant 0 : index
    %c0_17 = arith.constant 0 : index
    %16 = vector.load %arg3[%c0_15, %c0_16, %c0_17] : memref<9x4x4xf32, #tpu.memory_space<vmem>>, vector<1x4x4xf32>
    %17 = vector.shape_cast %16 : vector<1x4x4xf32> to vector<4x4xf32>
    %cst_18 = arith.constant dense<0.000000e+00> : vector<4x256xf32>
    %18 = tpu.matmul %17, %15, %cst_18 {dimension_numbers = #tpu.dot_dimension_numbers<[1], [1], [0], [0], [0, 0, 1, 0], [], []>} : vector<4x4xf32>, vector<256x4xf32>, vector<4x256xf32> -> vector<4x256xf32>
    %19 = arith.addf %13, %18 : vector<4x256xf32>
    %c0_19 = arith.constant 0 : index
    %c8_20 = arith.constant 8 : index
    %c0_21 = arith.constant 0 : index
    %20 = vector.load %arg9[%c0_19, %c8_20, %c0_21] : memref<18x32x4xf32, #tpu.memory_space<vmem>>, vector<16x16x4xf32>
    %21 = vector.shape_cast %20 : vector<16x16x4xf32> to vector<256x4xf32>
    %c1_22 = arith.constant 1 : index
    %c0_23 = arith.constant 0 : index
    %c0_24 = arith.constant 0 : index
    %22 = vector.load %arg3[%c1_22, %c0_23, %c0_24] : memref<9x4x4xf32, #tpu.memory_space<vmem>>, vector<1x4x4xf32>
    %23 = vector.shape_cast %22 : vector<1x4x4xf32> to vector<4x4xf32>
    %cst_25 = arith.constant dense<0.000000e+00> : vector<4x256xf32>
    %24 = tpu.matmul %23, %21, %cst_25 {dimension_numbers = #tpu.dot_dimension_numbers<[1], [1], [0], [0], [0, 0, 1, 0], [], []>} : vector<4x4xf32>, vector<256x4xf32>, vector<4x256xf32> -> vector<4x256xf32>
    %25 = arith.addf %19, %24 : vector<4x256xf32>
    %c0_26 = arith.constant 0 : index
    %c9 = arith.constant 9 : index
    %c0_27 = arith.constant 0 : index
    %26 = vector.load %arg9[%c0_26, %c9, %c0_27] : memref<18x32x4xf32, #tpu.memory_space<vmem>>, vector<16x16x4xf32>
    %27 = vector.shape_cast %26 : vector<16x16x4xf32> to vector<256x4xf32>
    %c2 = arith.constant 2 : index
    %c0_28 = arith.constant 0 : index
    %c0_29 = arith.constant 0 : index
    %28 = vector.load %arg3[%c2, %c0_28, %c0_29] : memref<9x4x4xf32, #tpu.memory_space<vmem>>, vector<1x4x4xf32>
    %29 = vector.shape_cast %28 : vector<1x4x4xf32> to vector<4x4xf32>
    %cst_30 = arith.constant dense<0.000000e+00> : vector<4x256xf32>
    %30 = tpu.matmul %29, %27, %cst_30 {dimension_numbers = #tpu.dot_dimension_numbers<[1], [1], [0], [0], [0, 0, 1, 0], [], []>} : vector<4x4xf32>, vector<256x4xf32>, vector<4x256xf32> -> vector<4x256xf32>
    %31 = arith.addf %25, %30 : vector<4x256xf32>
    %c1_31 = arith.constant 1 : index
    %c7_32 = arith.constant 7 : index
    %c0_33 = arith.constant 0 : index
    %32 = vector.load %arg9[%c1_31, %c7_32, %c0_33] : memref<18x32x4xf32, #tpu.memory_space<vmem>>, vector<16x16x4xf32>
    %33 = vector.shape_cast %32 : vector<16x16x4xf32> to vector<256x4xf32>
    %c3 = arith.constant 3 : index
    %c0_34 = arith.constant 0 : index
    %c0_35 = arith.constant 0 : index
    %34 = vector.load %arg3[%c3, %c0_34, %c0_35] : memref<9x4x4xf32, #tpu.memory_space<vmem>>, vector<1x4x4xf32>
    %35 = vector.shape_cast %34 : vector<1x4x4xf32> to vector<4x4xf32>
    %cst_36 = arith.constant dense<0.000000e+00> : vector<4x256xf32>
    %36 = tpu.matmul %35, %33, %cst_36 {dimension_numbers = #tpu.dot_dimension_numbers<[1], [1], [0], [0], [0, 0, 1, 0], [], []>} : vector<4x4xf32>, vector<256x4xf32>, vector<4x256xf32> -> vector<4x256xf32>
    %37 = arith.addf %31, %36 : vector<4x256xf32>
    %c1_37 = arith.constant 1 : index
    %c8_38 = arith.constant 8 : index
    %c0_39 = arith.constant 0 : index
    %38 = vector.load %arg9[%c1_37, %c8_38, %c0_39] : memref<18x32x4xf32, #tpu.memory_space<vmem>>, vector<16x16x4xf32>
    %39 = vector.shape_cast %38 : vector<16x16x4xf32> to vector<256x4xf32>
    %c4 = arith.constant 4 : index
    %c0_40 = arith.constant 0 : index
    %c0_41 = arith.constant 0 : index
    %40 = vector.load %arg3[%c4, %c0_40, %c0_41] : memref<9x4x4xf32, #tpu.memory_space<vmem>>, vector<1x4x4xf32>
    %41 = vector.shape_cast %40 : vector<1x4x4xf32> to vector<4x4xf32>
    %cst_42 = arith.constant dense<0.000000e+00> : vector<4x256xf32>
    %42 = tpu.matmul %41, %39, %cst_42 {dimension_numbers = #tpu.dot_dimension_numbers<[1], [1], [0], [0], [0, 0, 1, 0], [], []>} : vector<4x4xf32>, vector<256x4xf32>, vector<4x256xf32> -> vector<4x256xf32>
    %43 = arith.addf %37, %42 : vector<4x256xf32>
    %c1_43 = arith.constant 1 : index
    %c9_44 = arith.constant 9 : index
    %c0_45 = arith.constant 0 : index
    %44 = vector.load %arg9[%c1_43, %c9_44, %c0_45] : memref<18x32x4xf32, #tpu.memory_space<vmem>>, vector<16x16x4xf32>
    %45 = vector.shape_cast %44 : vector<16x16x4xf32> to vector<256x4xf32>
    %c5 = arith.constant 5 : index
    %c0_46 = arith.constant 0 : index
    %c0_47 = arith.constant 0 : index
    %46 = vector.load %arg3[%c5, %c0_46, %c0_47] : memref<9x4x4xf32, #tpu.memory_space<vmem>>, vector<1x4x4xf32>
    %47 = vector.shape_cast %46 : vector<1x4x4xf32> to vector<4x4xf32>
    %cst_48 = arith.constant dense<0.000000e+00> : vector<4x256xf32>
    %48 = tpu.matmul %47, %45, %cst_48 {dimension_numbers = #tpu.dot_dimension_numbers<[1], [1], [0], [0], [0, 0, 1, 0], [], []>} : vector<4x4xf32>, vector<256x4xf32>, vector<4x256xf32> -> vector<4x256xf32>
    %49 = arith.addf %43, %48 : vector<4x256xf32>
    %c2_49 = arith.constant 2 : index
    %c7_50 = arith.constant 7 : index
    %c0_51 = arith.constant 0 : index
    %50 = vector.load %arg9[%c2_49, %c7_50, %c0_51] : memref<18x32x4xf32, #tpu.memory_space<vmem>>, vector<16x16x4xf32>
    %51 = vector.shape_cast %50 : vector<16x16x4xf32> to vector<256x4xf32>
    %c6 = arith.constant 6 : index
    %c0_52 = arith.constant 0 : index
    %c0_53 = arith.constant 0 : index
    %52 = vector.load %arg3[%c6, %c0_52, %c0_53] : memref<9x4x4xf32, #tpu.memory_space<vmem>>, vector<1x4x4xf32>
    %53 = vector.shape_cast %52 : vector<1x4x4xf32> to vector<4x4xf32>
    %cst_54 = arith.constant dense<0.000000e+00> : vector<4x256xf32>
    %54 = tpu.matmul %53, %51, %cst_54 {dimension_numbers = #tpu.dot_dimension_numbers<[1], [1], [0], [0], [0, 0, 1, 0], [], []>} : vector<4x4xf32>, vector<256x4xf32>, vector<4x256xf32> -> vector<4x256xf32>
    %55 = arith.addf %49, %54 : vector<4x256xf32>
    %c2_55 = arith.constant 2 : index
    %c8_56 = arith.constant 8 : index
    %c0_57 = arith.constant 0 : index
    %56 = vector.load %arg9[%c2_55, %c8_56, %c0_57] : memref<18x32x4xf32, #tpu.memory_space<vmem>>, vector<16x16x4xf32>
    %57 = vector.shape_cast %56 : vector<16x16x4xf32> to vector<256x4xf32>
    %c7_58 = arith.constant 7 : index
    %c0_59 = arith.constant 0 : index
    %c0_60 = arith.constant 0 : index
    %58 = vector.load %arg3[%c7_58, %c0_59, %c0_60] : memref<9x4x4xf32, #tpu.memory_space<vmem>>, vector<1x4x4xf32>
    %59 = vector.shape_cast %58 : vector<1x4x4xf32> to vector<4x4xf32>
    %cst_61 = arith.constant dense<0.000000e+00> : vector<4x256xf32>
    %60 = tpu.matmul %59, %57, %cst_61 {dimension_numbers = #tpu.dot_dimension_numbers<[1], [1], [0], [0], [0, 0, 1, 0], [], []>} : vector<4x4xf32>, vector<256x4xf32>, vector<4x256xf32> -> vector<4x256xf32>
    %61 = arith.addf %55, %60 : vector<4x256xf32>
    %c2_62 = arith.constant 2 : index
    %c9_63 = arith.constant 9 : index
    %c0_64 = arith.constant 0 : index
    %62 = vector.load %arg9[%c2_62, %c9_63, %c0_64] : memref<18x32x4xf32, #tpu.memory_space<vmem>>, vector<16x16x4xf32>
    %63 = vector.shape_cast %62 : vector<16x16x4xf32> to vector<256x4xf32>
    %c8_65 = arith.constant 8 : index
    %c0_66 = arith.constant 0 : index
    %c0_67 = arith.constant 0 : index
    %64 = vector.load %arg3[%c8_65, %c0_66, %c0_67] : memref<9x4x4xf32, #tpu.memory_space<vmem>>, vector<1x4x4xf32>
    %65 = vector.shape_cast %64 : vector<1x4x4xf32> to vector<4x4xf32>
    %cst_68 = arith.constant dense<0.000000e+00> : vector<4x256xf32>
    %66 = tpu.matmul %65, %63, %cst_68 {dimension_numbers = #tpu.dot_dimension_numbers<[1], [1], [0], [0], [0, 0, 1, 0], [], []>} : vector<4x4xf32>, vector<256x4xf32>, vector<4x256xf32> -> vector<4x256xf32>
    %67 = arith.addf %61, %66 : vector<4x256xf32>
    %c0_69 = arith.constant 0 : index
    %c0_70 = arith.constant 0 : index
    %68 = vector.load %arg6[%c0_69, %c0_70] : memref<4x1xf32, #tpu.memory_space<vmem>>, vector<4x1xf32>
    %69 = vector.broadcast %68 : vector<4x1xf32> to vector<4x256xf32>
    %70 = arith.addf %67, %69 : vector<4x256xf32>
    %cst_71 = arith.constant 0.000000e+00 : f32
    %71 = vector.broadcast %cst_71 : f32 to vector<4x256xf32>
    %72 = arith.maximumf %70, %71 : vector<4x256xf32>
    %c0_72 = arith.constant 0 : index
    %c0_73 = arith.constant 0 : index
    %73 = vector.load %arg4[%c0_72, %c0_73] : memref<16x4xf32, #tpu.memory_space<vmem>>, vector<16x4xf32>
    %cst_74 = arith.constant dense<0.000000e+00> : vector<16x256xf32>
    %74 = tpu.matmul %73, %72, %cst_74 {dimension_numbers = #tpu.dot_dimension_numbers<[1], [0], [0], [1], [0, 0, 1, 1], [], []>} : vector<16x4xf32>, vector<4x256xf32>, vector<16x256xf32> -> vector<16x256xf32>
    %c0_75 = arith.constant 0 : index
    %c0_76 = arith.constant 0 : index
    %75 = vector.load %arg7[%c0_75, %c0_76] : memref<16x1xf32, #tpu.memory_space<vmem>>, vector<16x1xf32>
    %76 = vector.broadcast %75 : vector<16x1xf32> to vector<16x256xf32>
    %77 = arith.addf %74, %76 : vector<16x256xf32>
    %78 = arith.addf %77, %1 : vector<16x256xf32>
    %cst_77 = arith.constant 0.000000e+00 : f32
    %79 = vector.broadcast %cst_77 : f32 to vector<16x256xf32>
    %80 = arith.maximumf %78, %79 : vector<16x256xf32>
    %c0_78 = arith.constant 0 : index
    %c0_79 = arith.constant 0 : index
    %c0_80 = arith.constant 0 : index
    %81 = vector.load %arg8[%c0_78, %c0_79, %c0_80] : memref<1x16x256xf32, #tpu.memory_space<vmem>>, vector<1x16x256xf32>
    %82 = vector.shape_cast %81 : vector<1x16x256xf32> to vector<16x256xf32>
    %83 = vector.shape_cast %80 : vector<16x256xf32> to vector<1x16x256xf32>
    tpu.vector_store %arg8[%c0_78, %c0_79, %c0_80], %83 {strides = array<i32>} : memref<1x16x256xf32, #tpu.memory_space<vmem>>, vector<1x16x256xf32>,
    return
  }
  func.func @transform_0(%arg0: i32) -> (i32, i32, i32) {
    %c0_i32 = arith.constant 0 : i32
    %c0_i32_0 = arith.constant 0 : i32
    %c0_i32_1 = arith.constant 0 : i32
    return %arg0, %c0_i32, %c0_i32_0 : i32, i32, i32
  }
  func.func @transform_1(%arg0: i32) -> (i32, i32) {
    %c0_i32 = arith.constant 0 : i32
    %c0_i32_0 = arith.constant 0 : i32
    %c0_i32_1 = arith.constant 0 : i32
    return %c0_i32, %c0_i32_0 : i32, i32
  }
  func.func @transform_2(%arg0: i32) -> (i32, i32, i32) {
    %c0_i32 = arith.constant 0 : i32
    %c0_i32_0 = arith.constant 0 : i32
    %c0_i32_1 = arith.constant 0 : i32
    %c0_i32_2 = arith.constant 0 : i32
    return %c0_i32, %c0_i32_0, %c0_i32_1 : i32, i32, i32
  }
  func.func @transform_3(%arg0: i32) -> (i32, i32) {
    %c0_i32 = arith.constant 0 : i32
    %c0_i32_0 = arith.constant 0 : i32
    %c0_i32_1 = arith.constant 0 : i32
    return %c0_i32, %c0_i32_0 : i32, i32
  }
  func.func @transform_4(%arg0: i32) -> (i32, i32) {
    %c0_i32 = arith.constant 0 : i32
    %c0_i32_0 = arith.constant 0 : i32
    %c0_i32_1 = arith.constant 0 : i32
    return %c0_i32, %c0_i32_0 : i32, i32
  }
  func.func @transform_5(%arg0: i32) -> (i32, i32) {
    %c0_i32 = arith.constant 0 : i32
    %c0_i32_0 = arith.constant 0 : i32
    %c0_i32_1 = arith.constant 0 : i32
    return %c0_i32, %c0_i32_0 : i32, i32
  }
  func.func @transform_6(%arg0: i32) -> (i32, i32) {
    %c0_i32 = arith.constant 0 : i32
    %c0_i32_0 = arith.constant 0 : i32
    %c0_i32_1 = arith.constant 0 : i32
    return %c0_i32, %c0_i32_0 : i32, i32
  }
  func.func @transform_7(%arg0: i32) -> (i32, i32, i32) {
    %c0_i32 = arith.constant 0 : i32
    %c0_i32_0 = arith.constant 0 : i32
    %c0_i32_1 = arith.constant 0 : i32
    return %arg0, %c0_i32, %c0_i32_0 : i32, i32, i32
  }
}

</mosaic_0001>

<llo_original>
// kernel: bottleneck_forward.1
$region0: #{bottleneck_forward.1}
  #allocation0 [shape = 'u32[]', space=smem, size = 0x4, offset = 0x4, fixed_abs, tag = 'smem constant byte address 0x4 - core index']
  #allocation1 [shape = 'u32[72,128]{1,0:T(1,128)}', space=vmem, size = 0x9000, scoped, tag = 'internal scratch']
  #allocation2 [shape = 'f32[18,32,4]{2,1,0:T(8,128)}', space=vmem, size = 0x48000, scoped, tag = 'scratch operand']
  %s0 = inlined_call_operand.vmem [shape: f32[2,16,256], index: 0, kind: input, shape index: {}]
  %s1 = inlined_call_operand.vmem [shape: f32[16,4], index: 1, kind: input, shape index: {}]
  %s2 = inlined_call_operand.vmem [shape: f32[9,4,4], index: 2, kind: input, shape index: {}]
  %s3 = inlined_call_operand.vmem [shape: f32[16,4], index: 3, kind: input, shape index: {}]
  %s4 = inlined_call_operand.vmem [shape: f32[1,4], index: 4, kind: input, shape index: {}]
  %s5 = inlined_call_operand.vmem [shape: f32[4,1], index: 5, kind: input, shape index: {}]
  %s6 = inlined_call_operand.vmem [shape: f32[16,1], index: 6, kind: input, shape index: {}]
  %s7 = inlined_call_operand.vmem [shape: f32[2,16,256], index: 7, kind: output, shape index: {}]
  %s8 = sld [smem:[#allocation0]]
  $region61: #{bottleneck_forward.1} parent=0
    _
  %s10 = ssub.s32 1, %s8
  %s11 = scalar_select 0, %s10, %s8
  loop: start=0, step=1, limit=4
  $region2: #{bottleneck_forward.1} parent=0 // loop_pre_header
    _
  $region3: #{bottleneck_forward.1} parent=0 // loop_header
    %s13 = sphi 0, %s17
    %p14 = scmp.ge.s32.totalorder %s13, 4
    %s23 = sphi 0, %s25
    %s26 = sphi 0, %s23
    %s27 = sphi 0, %s26
    %s43 = sphi 0, %s27
    %s47 = sphi 0, %s47
    %s49 = sphi 0, %s47
    %s50 = sphi 0, %s49
    %s64 = sphi 0, %s50
    %s68 = sphi 0, %s68
    %s70 = sphi 0, %s68
    %s71 = sphi 0, %s70
    %s85 = sphi 0, %s71
    %s89 = sphi 0, %s89
    %s91 = sphi 0, %s89
    %s92 = sphi 0, %s91
    %s106 = sphi 0, %s92
    %s110 = sphi 0, %s110
    %s112 = sphi 0, %s110
    %s113 = sphi 0, %s112
    %s127 = sphi 0, %s113
    %s131 = sphi 0, %s131
    %s133 = sphi 0, %s131
    %s134 = sphi 0, %s133
    %s148 = sphi 0, %s134
    %s152 = sphi 0, %s152
    %s154 = sphi 0, %s152
    %s155 = sphi 0, %s154
    %s169 = sphi 0, %s155
    %s175 = sphi 0, %s177
    %s178 = sphi 0, %s175
    %s179 = sphi 0, %s178
    %s195 = sphi 0, %s179
  $region4: #{bottleneck_forward.1} parent=0 // loop_header_branch
    %16 = sbr.rel (%p14) target = $region8
  $region5: #{bottleneck_forward.1} parent=0 // loop_body
    %s18 = ssub.s32 %s13, 1
    %s19 = ssub.s32 %s13, 2
    %s20 = sadd.s32 %s13, 1
    %s21 = ssub.s32 %s13, %s20
    %p22 = scmp.eq.s32.totalorder %s21, 0
    %s24 = sadd.s32 %s23, 1
    %s25 = scalar_select %p22, %s23, %s24
    %p28 = pneg %p22
    %p29 = scmp.eq.s32.totalorder %s13, 1
    %p30 = por %p28, %p29
    %p31 = scmp.ne.s32.totalorder %s23, %s26
    %p32 = scmp.eq.s32.totalorder %s13, 0
    %p33 = por %p31, %p32
    %p34 = scmp.ne.s32.totalorder %s23, %s26
    %p35 = scmp.eq.s32.totalorder %s18, 1
    %p36 = por %p34, %p35
    %p37 = scmp.ne.s32.totalorder %s26, %s27
    %p38 = scmp.eq.s32.totalorder %s18, 0
    %p39 = por %p37, %p38
    %p40 = scmp.ne.s32.totalorder %s26, %s27
    %p41 = scmp.eq.s32.totalorder %s19, 1
    %p42 = por %p40, %p41
    %p44 = scmp.ne.s32.totalorder %s27, %s43
    %p45 = scmp.eq.s32.totalorder %s19, 0
    %p46 = por %p44, %p45
    %s48 = sadd.s32 %s47, 1
    %p51 = scmp.eq.s32.totalorder %s13, 1
    %p52 = scmp.ne.s32.totalorder %s47, %s49
    %p53 = scmp.eq.s32.totalorder %s13, 0
    %p54 = por %p52, %p53
    %p55 = scmp.ne.s32.totalorder %s47, %s49
    %p56 = scmp.eq.s32.totalorder %s18, 1
    %p57 = por %p55, %p56
    %p58 = scmp.ne.s32.totalorder %s49, %s50
    %p59 = scmp.eq.s32.totalorder %s18, 0
    %p60 = por %p58, %p59
    %p61 = scmp.ne.s32.totalorder %s49, %s50
    %p62 = scmp.eq.s32.totalorder %s19, 1
    %p63 = por %p61, %p62
    %p65 = scmp.ne.s32.totalorder %s50, %s64
    %p66 = scmp.eq.s32.totalorder %s19, 0
    %p67 = por %p65, %p66
    %s69 = sadd.s32 %s68, 1
    %p72 = scmp.eq.s32.totalorder %s13, 1
    %p73 = scmp.ne.s32.totalorder %s68, %s70
    %p74 = scmp.eq.s32.totalorder %s13, 0
    %p75 = por %p73, %p74
    %p76 = scmp.ne.s32.totalorder %s68, %s70
    %p77 = scmp.eq.s32.totalorder %s18, 1
    %p78 = por %p76, %p77
    %p79 = scmp.ne.s32.totalorder %s70, %s71
    %p80 = scmp.eq.s32.totalorder %s18, 0
    %p81 = por %p79, %p80
    %p82 = scmp.ne.s32.totalorder %s70, %s71
    %p83 = scmp.eq.s32.totalorder %s19, 1
    %p84 = por %p82, %p83
    %p86 = scmp.ne.s32.totalorder %s71, %s85
    %p87 = scmp.eq.s32.totalorder %s19, 0
    %p88 = por %p86, %p87
    %s90 = sadd.s32 %s89, 1
    %p93 = scmp.eq.s32.totalorder %s13, 1
    %p94 = scmp.ne.s32.totalorder %s89, %s91
    %p95 = scmp.eq.s32.totalorder %s13, 0
    %p96 = por %p94, %p95
    %p97 = scmp.ne.s32.totalorder %s89, %s91
    %p98 = scmp.eq.s32.totalorder %s18, 1
    %p99 = por %p97, %p98
    %p100 = scmp.ne.s32.totalorder %s91, %s92
    %p101 = scmp.eq.s32.totalorder %s18, 0
    %p102 = por %p100, %p101
    %p103 = scmp.ne.s32.totalorder %s91, %s92
    %p104 = scmp.eq.s32.totalorder %s19, 1
    %p105 = por %p103, %p104
    %p107 = scmp.ne.s32.totalorder %s92, %s106
    %p108 = scmp.eq.s32.totalorder %s19, 0
    %p109 = por %p107, %p108
    %s111 = sadd.s32 %s110, 1
    %p114 = scmp.eq.s32.totalorder %s13, 1
    %p115 = scmp.ne.s32.totalorder %s110, %s112
    %p116 = scmp.eq.s32.totalorder %s13, 0
    %p117 = por %p115, %p116
    %p118 = scmp.ne.s32.totalorder %s110, %s112
    %p119 = scmp.eq.s32.totalorder %s18, 1
    %p120 = por %p118, %p119
    %p121 = scmp.ne.s32.totalorder %s112, %s113
    %p122 = scmp.eq.s32.totalorder %s18, 0
    %p123 = por %p121, %p122
    %p124 = scmp.ne.s32.totalorder %s112, %s113
    %p125 = scmp.eq.s32.totalorder %s19, 1
    %p126 = por %p124, %p125
    %p128 = scmp.ne.s32.totalorder %s113, %s127
    %p129 = scmp.eq.s32.totalorder %s19, 0
    %p130 = por %p128, %p129
    %s132 = sadd.s32 %s131, 1
    %p135 = scmp.eq.s32.totalorder %s13, 1
    %p136 = scmp.ne.s32.totalorder %s131, %s133
    %p137 = scmp.eq.s32.totalorder %s13, 0
    %p138 = por %p136, %p137
    %p139 = scmp.ne.s32.totalorder %s131, %s133
    %p140 = scmp.eq.s32.totalorder %s18, 1
    %p141 = por %p139, %p140
    %p142 = scmp.ne.s32.totalorder %s133, %s134
    %p143 = scmp.eq.s32.totalorder %s18, 0
    %p144 = por %p142, %p143
    %p145 = scmp.ne.s32.totalorder %s133, %s134
    %p146 = scmp.eq.s32.totalorder %s19, 1
    %p147 = por %p145, %p146
    %p149 = scmp.ne.s32.totalorder %s134, %s148
    %p150 = scmp.eq.s32.totalorder %s19, 0
    %p151 = por %p149, %p150
    %s153 = sadd.s32 %s152, 1
    %p156 = scmp.eq.s32.totalorder %s13, 1
    %p157 = scmp.ne.s32.totalorder %s152, %s154
    %p158 = scmp.eq.s32.totalorder %s13, 0
    %p159 = por %p157, %p158
    %p160 = scmp.ne.s32.totalorder %s152, %s154
    %p161 = scmp.eq.s32.totalorder %s18, 1
    %p162 = por %p160, %p161
    %p163 = scmp.ne.s32.totalorder %s154, %s155
    %p164 = scmp.eq.s32.totalorder %s18, 0
    %p165 = por %p163, %p164
    %p166 = scmp.ne.s32.totalorder %s154, %s155
    %p167 = scmp.eq.s32.totalorder %s19, 1
    %p168 = por %p166, %p167
    %p170 = scmp.ne.s32.totalorder %s155, %s169
    %p171 = scmp.eq.s32.totalorder %s19, 0
    %p172 = por %p170, %p171
    %s173 = ssub.s32 %s13, %s20
    %p174 = scmp.eq.s32.totalorder %s173, 0
    %s176 = sadd.s32 %s175, 1
    %s177 = scalar_select %p174, %s175, %s176
    %p180 = pneg %p174
    %p181 = scmp.eq.s32.totalorder %s13, 1
    %p182 = por %p180, %p181
    %p183 = scmp.ne.s32.totalorder %s175, %s178
    %p184 = scmp.eq.s32.totalorder %s13, 0
    %p185 = por %p183, %p184
    %p186 = scmp.ne.s32.totalorder %s175, %s178
    %p187 = scmp.eq.s32.totalorder %s18, 1
    %p188 = por %p186, %p187
    %p189 = scmp.ne.s32.totalorder %s178, %s179
    %p190 = scmp.eq.s32.totalorder %s18, 0
    %p191 = por %p189, %p190
    %p192 = scmp.ne.s32.totalorder %s178, %s179
    %p193 = scmp.eq.s32.totalorder %s19, 1
    %p194 = por %p192, %p193
    %p196 = scmp.ne.s32.totalorder %s179, %s195
    %p197 = scmp.eq.s32.totalorder %s19, 0
    %p198 = por %p196, %p197
    %p199 = scmp.le.s32.totalorder 1, %s13
    %p200 = scmp.lt.s32.totalorder %s13, 3
    %p201 = pnand %p199, %p200
    %p202 = pneg %p201
    // Predicated region
    $region9: #{bottleneck_forward.1} parent=5 // pred_check
      _
    $region10: #{bottleneck_forward.1} parent=5 // pred_check_branch
      %204 = sbr.rel (%p201) target = $region12
    $region11: #{bottleneck_forward.1} parent=5 // pred_region
      %s205 = ssub.s32 %s13, 1
      // Predicated region
      $region13: #{bottleneck_forward.1} parent=11 // pred_check
        %p206 = pneg %p60
      $region14: #{bottleneck_forward.1} parent=11 // pred_check_branch
        %208 = sbr.rel (%p206) target = $region16
      $region15: #{bottleneck_forward.1} parent=11 // pred_region
        _
      $region16: #{bottleneck_forward.1} parent=11 // pred_fallthru
        _
      // Predicated region
      $region17: #{bottleneck_forward.1} parent=11 // pred_check
        %p209 = pneg %p81
      $region18: #{bottleneck_forward.1} parent=11 // pred_check_branch
        %211 = sbr.rel (%p209) target = $region20
      $region19: #{bottleneck_forward.1} parent=11 // pred_region
        _
      $region20: #{bottleneck_forward.1} parent=11 // pred_fallthru
        _
      // Predicated region
      $region21: #{bottleneck_forward.1} parent=11 // pred_check
        %p212 = pneg %p102
      $region22: #{bottleneck_forward.1} parent=11 // pred_check_branch
        %214 = sbr.rel (%p212) target = $region24
      $region23: #{bottleneck_forward.1} parent=11 // pred_region
        _
      $region24: #{bottleneck_forward.1} parent=11 // pred_fallthru
        _
      // Predicated region
      $region25: #{bottleneck_forward.1} parent=11 // pred_check
        %p215 = pneg %p123
      $region26: #{bottleneck_forward.1} parent=11 // pred_check_branch
        %217 = sbr.rel (%p215) target = $region28
      $region27: #{bottleneck_forward.1} parent=11 // pred_region
        _
      $region28: #{bottleneck_forward.1} parent=11 // pred_fallthru
        _
      // Predicated region
      $region29: #{bottleneck_forward.1} parent=11 // pred_check
        %p218 = pneg %p144
      $region30: #{bottleneck_forward.1} parent=11 // pred_check_branch
        %220 = sbr.rel (%p218) target = $region32
      $region31: #{bottleneck_forward.1} parent=11 // pred_region
        _
      $region32: #{bottleneck_forward.1} parent=11 // pred_fallthru
        _
      // Predicated region
      $region33: #{bottleneck_forward.1} parent=11 // pred_check
        %p221 = pneg %p165
      $region34: #{bottleneck_forward.1} parent=11 // pred_check_branch
        %223 = sbr.rel (%p221) target = $region36
      $region35: #{bottleneck_forward.1} parent=11 // pred_region
        _
      $region36: #{bottleneck_forward.1} parent=11 // pred_fallthru
        _
    $region12: #{bottleneck_forward.1} parent=5 // pred_fallthru
      _
    %p224 = scmp.lt.s32.totalorder %s13, 2
    // Predicated region
    $region37: #{bottleneck_forward.1} parent=5 // pred_check
      %p225 = pneg %p224
    $region38: #{bottleneck_forward.1} parent=5 // pred_check_branch
      %227 = sbr.rel (%p225) target = $region40
    $region39: #{bottleneck_forward.1} parent=5 // pred_region
      // Predicated region
      $region41: #{bottleneck_forward.1} parent=39 // pred_check
        %p228 = pneg %p33
      $region42: #{bottleneck_forward.1} parent=39 // pred_check_branch
        %230 = sbr.rel (%p228) target = $region44
      $region43: #{bottleneck_forward.1} parent=39 // pred_region
        %p231 = scmp.lt.s32.totalorder %s13, 1
        %s232 = scalar_select %p231, %s13, 1
        %s233 = smul.addr %s232, 4
        %s234 = smul.addr %s233, 8
        %s235 = scalar_lea.vmem %s0, %s234
      $region44: #{bottleneck_forward.1} parent=39 // pred_fallthru
        _
    $region40: #{bottleneck_forward.1} parent=5 // pred_fallthru
      _
    %p236 = scmp.le.s32.totalorder 1, %s13
    %p237 = scmp.lt.s32.totalorder %s13, 3
    %p238 = pnand %p236, %p237
    %p239 = pneg %p238
    // Predicated region
    $region45: #{bottleneck_forward.1} parent=5 // pred_check
      _
    $region46: #{bottleneck_forward.1} parent=5 // pred_check_branch
      %241 = sbr.rel (%p238) target = $region48
    $region47: #{bottleneck_forward.1} parent=5 // pred_region
      %s242 = ssub.s32 %s13, 1
      %p243 = scmp.lt.s32.totalorder %s18, 1
      %s244 = scalar_select %p243, %s18, 1
      %s245 = smul.addr %s244, 4
      %s246 = smul.addr %s245, 8
      %s247 = scalar_lea.vmem %s0, %s246
      %p248 = pneg %p39
      %p249 = pneg %p36
      %p250 = pneg %p60
      %p251 = pneg %p57
      %p252 = pneg %p81
      %p253 = pneg %p78
      %p254 = pneg %p102
      %p255 = pneg %p99
      %p256 = pneg %p123
      %p257 = pneg %p120
      %p258 = pneg %p144
      %p259 = pneg %p141
      %p260 = pneg %p165
      %p261 = pneg %p162
      %p262 = pneg %p191
      %p263 = pneg %p188
      %p264 = scmp.lt.s32.totalorder %s18, 1
      %s265 = scalar_select %p264, %s18, 1
      %s266 = smul.addr %s265, 4
      %s267 = smul.addr %s266, 8
      %s268 = scalar_lea.vmem %s7, %s267
      %p269 = scmp.lt.s32.totalorder %s18, 1
      %s270 = scalar_select %p269, %s18, 1
      %s271 = smul.addr %s270, 4
      %s272 = smul.addr %s271, 8
      %s273 = scalar_lea.vmem %s0, %s272
      %p274 = scmp.lt.s32.totalorder %s18, 1
      %s275 = scalar_select %p274, %s18, 1
      %s276 = smul.addr %s275, 4
      %s277 = smul.addr %s276, 8
      %s278 = scalar_lea.vmem %s7, %s277
      %v279 = vld [vmem:[%s273] sm:$0xff]
      %v280 = vld [vmem:[%s273 + $0x8] sm:$0xff]
      %v281 = vld [vmem:[%s273 + $0x10] sm:$0xff]
      %v282 = vld [vmem:[%s273 + $0x18] sm:$0xff]
      %v283 = vld [vmem:[%s1] sm:$0xff]
      %v284 = vld [vmem:[%s1 + $0x8] sm:$0xff]
      %v285 = vld [vmem:[%s4] sm:$0x1]
      %v287 = vperm.slane %v285, 0
      %289 = vxpose.xlu0.b32.start [1/16] %v279, 128
      %290 = vxpose.xlu0.b32.cont [2/16] %v281, 128
      %291 = vxpose.xlu0.b32.cont [3/16] 0.0, 128
      %292 = vxpose.xlu0.b32.cont [4/16] 0.0, 128
      %293 = vxpose.xlu0.b32.cont [5/16] 0.0, 128
      %294 = vxpose.xlu0.b32.cont [6/16] 0.0, 128
      %295 = vxpose.xlu0.b32.cont [7/16] 0.0, 128
      %296 = vxpose.xlu0.b32.cont [8/16] 0.0, 128
      %297 = vxpose.xlu0.b32.cont [9/16] 0.0, 128
      %298 = vxpose.xlu0.b32.cont [10/16] 0.0, 128
      %299 = vxpose.xlu0.b32.cont [11/16] 0.0, 128
      %300 = vxpose.xlu0.b32.cont [12/16] 0.0, 128
      %301 = vxpose.xlu0.b32.cont [13/16] 0.0, 128
      %302 = vxpose.xlu0.b32.cont [14/16] 0.0, 128
      %303 = vxpose.xlu0.b32.cont [15/16] 0.0, 128
      %304 = vxpose.xlu0.b32.end [16/16] 0.0, 128
      %v305 = vpop.trf.xlu0
      %v306 = vpop.trf.xlu0
      %v307 = vpop.trf.xlu0
      %v308 = vpop.trf.xlu0
      %v309 = vpop.trf.xlu0
      %v310 = vpop.trf.xlu0
      %v311 = vpop.trf.xlu0
      %v312 = vpop.trf.xlu0
      %v313 = vpop.trf.xlu0
      %v314 = vpop.trf.xlu0
      %v315 = vpop.trf.xlu0
      %v316 = vpop.trf.xlu0
      %v317 = vpop.trf.xlu0
      %v318 = vpop.trf.xlu0
      %v319 = vpop.trf.xlu0
      %v320 = vpop.trf.xlu0
      %321 = vxpose.xlu0.b32.start [1/16] %v280, 128
      %322 = vxpose.xlu0.b32.cont [2/16] %v282, 128
      %323 = vxpose.xlu0.b32.cont [3/16] 0.0, 128
      %324 = vxpose.xlu0.b32.cont [4/16] 0.0, 128
      %325 = vxpose.xlu0.b32.cont [5/16] 0.0, 128
      %326 = vxpose.xlu0.b32.cont [6/16] 0.0, 128
      %327 = vxpose.xlu0.b32.cont [7/16] 0.0, 128
      %328 = vxpose.xlu0.b32.cont [8/16] 0.0, 128
      %329 = vxpose.xlu0.b32.cont [9/16] 0.0, 128
      %330 = vxpose.xlu0.b32.cont [10/16] 0.0, 128
      %331 = vxpose.xlu0.b32.cont [11/16] 0.0, 128
      %332 = vxpose.xlu0.b32.cont [12/16] 0.0, 128
      %333 = vxpose.xlu0.b32.cont [13/16] 0.0, 128
      %334 = vxpose.xlu0.b32.cont [14/16] 0.0, 128
      %335 = vxpose.xlu0.b32.cont [15/16] 0.0, 128
      %336 = vxpose.xlu0.b32.end [16/16] 0.0, 128
      %v337 = vpop.trf.xlu0
      %v338 = vpop.trf.xlu0
      %v339 = vpop.trf.xlu0
      %v340 = vpop.trf.xlu0
      %v341 = vpop.trf.xlu0
      %v342 = vpop.trf.xlu0
      %v343 = vpop.trf.xlu0
      %v344 = vpop.trf.xlu0
      %v345 = vpop.trf.xlu0
      %v346 = vpop.trf.xlu0
      %v347 = vpop.trf.xlu0
      %v348 = vpop.trf.xlu0
      %v349 = vpop.trf.xlu0
      %v350 = vpop.trf.xlu0
      %v351 = vpop.trf.xlu0
      %v352 = vpop.trf.xlu0
      %vm353 = vcmask 130048
      %v355 = vsel %vm353, %v305, 0
      %v358 = vsel %vm353, %v306, 0
      %v361 = vsel %vm353, %v307, 0
      %v364 = vsel %vm353, %v308, 0
      %v367 = vsel %vm353, %v309, 0
      %v370 = vsel %vm353, %v310, 0
      %v373 = vsel %vm353, %v311, 0
      %v376 = vsel %vm353, %v312, 0
      %v379 = vsel %vm353, %v313, 0
      %v382 = vsel %vm353, %v314, 0
      %v385 = vsel %vm353, %v315, 0
      %v388 = vsel %vm353, %v316, 0
      %v391 = vsel %vm353, %v317, 0
      %v394 = vsel %vm353, %v318, 0
      %v397 = vsel %vm353, %v319, 0
      %v400 = vsel %vm353, %v320, 0
      %v403 = vsel %vm353, %v337, 0
      %v406 = vsel %vm353, %v338, 0
      %v409 = vsel %vm353, %v339, 0
      %v412 = vsel %vm353, %v340, 0
      %v415 = vsel %vm353, %v341, 0
      %v418 = vsel %vm353, %v342, 0
      %v421 = vsel %vm353, %v343, 0
      %v424 = vsel %vm353, %v344, 0
      %v427 = vsel %vm353, %v345, 0
      %v430 = vsel %vm353, %v346, 0
      %v433 = vsel %vm353, %v347, 0
      %v436 = vsel %vm353, %v348, 0
      %v439 = vsel %vm353, %v349, 0
      %v442 = vsel %vm353, %v350, 0
      %v445 = vsel %vm353, %v351, 0
      %v448 = vsel %vm353, %v352, 0
      %450 = vmatpush.msra.mxu0 0.0
      %451 = vmatpush.msra.mxu0 0.0
      %452 = vmatpush.msra.mxu0 0.0
      %453 = vmatpush.msra.mxu0 0.0
      %454 = vmatpush.msra.mxu0 0.0
      %455 = vmatpush.msra.mxu0 0.0
      %456 = vmatpush.msra.mxu0 0.0
      %457 = vmatpush.msra.mxu0 0.0
      %458 = vmatpush.msra.mxu0 0.0
      %459 = vmatpush.msra.mxu0 0.0
      %460 = vmatpush.msra.mxu0 0.0
      %461 = vmatpush.msra.mxu0 0.0
      %462 = vmatpush.msra.mxu0 0.0
      %463 = vmatpush.msra.mxu0 0.0
      %464 = vmatpush.msra.mxu0 %v284
      %465 = vmatpush.msra.mxu0 %v283
      %466 = vmatmul.f32.gmra.mxu0 %v355
      %v467 = vpop.f32.mrf.mxu0
      %v468 = vadd.f32 %v287, %v467
      %469 = vmatmul.f32.gmra.mxu0 %v358
      %v470 = vpop.f32.mrf.mxu0
      %v471 = vadd.f32 %v287, %v470
      %472 = vmatmul.f32.gmra.mxu0 %v361
      %v473 = vpop.f32.mrf.mxu0
      %v474 = vadd.f32 %v287, %v473
      %475 = vmatmul.f32.gmra.mxu0 %v364
      %v476 = vpop.f32.mrf.mxu0
      %v477 = vadd.f32 %v287, %v476
      %478 = vmatmul.f32.gmra.mxu0 %v367
      %v479 = vpop.f32.mrf.mxu0
      %v480 = vadd.f32 %v287, %v479
      %481 = vmatmul.f32.gmra.mxu0 %v370
      %v482 = vpop.f32.mrf.mxu0
      %v483 = vadd.f32 %v287, %v482
      %484 = vmatmul.f32.gmra.mxu0 %v373
      %v485 = vpop.f32.mrf.mxu0
      %v486 = vadd.f32 %v287, %v485
      %487 = vmatmul.f32.gmra.mxu0 %v376
      %v488 = vpop.f32.mrf.mxu0
      %v489 = vadd.f32 %v287, %v488
      %490 = vmatmul.f32.gmra.mxu0 %v379
      %v491 = vpop.f32.mrf.mxu0
      %v492 = vadd.f32 %v287, %v491
      %493 = vmatmul.f32.gmra.mxu0 %v382
      %v494 = vpop.f32.mrf.mxu0
      %v495 = vadd.f32 %v287, %v494
      %496 = vmatmul.f32.gmra.mxu0 %v385
      %v497 = vpop.f32.mrf.mxu0
      %v498 = vadd.f32 %v287, %v497
      %499 = vmatmul.f32.gmra.mxu0 %v388
      %v500 = vpop.f32.mrf.mxu0
      %v501 = vadd.f32 %v287, %v500
      %502 = vmatmul.f32.gmra.mxu0 %v391
      %v503 = vpop.f32.mrf.mxu0
      %v504 = vadd.f32 %v287, %v503
      %505 = vmatmul.f32.gmra.mxu0 %v394
      %v506 = vpop.f32.mrf.mxu0
      %v507 = vadd.f32 %v287, %v506
      %508 = vmatmul.f32.gmra.mxu0 %v397
      %v509 = vpop.f32.mrf.mxu0
      %v510 = vadd.f32 %v287, %v509
      %511 = vmatmul.f32.gmra.mxu0 %v400
      %v512 = vpop.f32.mrf.mxu0
      %v513 = vadd.f32 %v287, %v512
      %514 = vmatmul.f32.gmra.mxu0 %v403
      %v515 = vpop.f32.mrf.mxu0
      %v516 = vadd.f32 %v287, %v515
      %517 = vmatmul.f32.gmra.mxu0 %v406
      %v518 = vpop.f32.mrf.mxu0
      %v519 = vadd.f32 %v287, %v518
      %520 = vmatmul.f32.gmra.mxu0 %v409
      %v521 = vpop.f32.mrf.mxu0
      %v522 = vadd.f32 %v287, %v521
      %523 = vmatmul.f32.gmra.mxu0 %v412
      %v524 = vpop.f32.mrf.mxu0
      %v525 = vadd.f32 %v287, %v524
      %526 = vmatmul.f32.gmra.mxu0 %v415
      %v527 = vpop.f32.mrf.mxu0
      %v528 = vadd.f32 %v287, %v527
      %529 = vmatmul.f32.gmra.mxu0 %v418
      %v530 = vpop.f32.mrf.mxu0
      %v531 = vadd.f32 %v287, %v530
      %532 = vmatmul.f32.gmra.mxu0 %v421
      %v533 = vpop.f32.mrf.mxu0
      %v534 = vadd.f32 %v287, %v533
      %535 = vmatmul.f32.gmra.mxu0 %v424
      %v536 = vpop.f32.mrf.mxu0
      %v537 = vadd.f32 %v287, %v536
      %538 = vmatmul.f32.gmra.mxu0 %v427
      %v539 = vpop.f32.mrf.mxu0
      %v540 = vadd.f32 %v287, %v539
      %541 = vmatmul.f32.gmra.mxu0 %v430
      %v542 = vpop.f32.mrf.mxu0
      %v543 = vadd.f32 %v287, %v542
      %544 = vmatmul.f32.gmra.mxu0 %v433
      %v545 = vpop.f32.mrf.mxu0
      %v546 = vadd.f32 %v287, %v545
      %547 = vmatmul.f32.gmra.mxu0 %v436
      %v548 = vpop.f32.mrf.mxu0
      %v549 = vadd.f32 %v287, %v548
      %550 = vmatmul.f32.gmra.mxu0 %v439
      %v551 = vpop.f32.mrf.mxu0
      %v552 = vadd.f32 %v287, %v551
      %553 = vmatmul.f32.gmra.mxu0 %v442
      %v554 = vpop.f32.mrf.mxu0
      %v555 = vadd.f32 %v287, %v554
      %556 = vmatmul.f32.gmra.mxu0 %v445
      %v557 = vpop.f32.mrf.mxu0
      %v558 = vadd.f32 %v287, %v557
      %559 = vmatmul.f32.gmra.mxu0 %v448
      %v560 = vpop.f32.mrf.mxu0
      %v561 = vadd.f32 %v287, %v560
      %562 = vdwg.mxu0
      %v563 = vmax.f32 %v468, 0.0
      %v564 = vmax.f32 %v471, 0.0
      %v565 = vmax.f32 %v474, 0.0
      %v566 = vmax.f32 %v477, 0.0
      %v567 = vmax.f32 %v480, 0.0
      %v568 = vmax.f32 %v483, 0.0
      %v569 = vmax.f32 %v486, 0.0
      %v570 = vmax.f32 %v489, 0.0
      %v571 = vmax.f32 %v492, 0.0
      %v572 = vmax.f32 %v495, 0.0
      %v573 = vmax.f32 %v498, 0.0
      %v574 = vmax.f32 %v501, 0.0
      %v575 = vmax.f32 %v504, 0.0
      %v576 = vmax.f32 %v507, 0.0
      %v577 = vmax.f32 %v510, 0.0
      %v578 = vmax.f32 %v513, 0.0
      %v579 = vmax.f32 %v516, 0.0
      %v580 = vmax.f32 %v519, 0.0
      %v581 = vmax.f32 %v522, 0.0
      %v582 = vmax.f32 %v525, 0.0
      %v583 = vmax.f32 %v528, 0.0
      %v584 = vmax.f32 %v531, 0.0
      %v585 = vmax.f32 %v534, 0.0
      %v586 = vmax.f32 %v537, 0.0
      %v587 = vmax.f32 %v540, 0.0
      %v588 = vmax.f32 %v543, 0.0
      %v589 = vmax.f32 %v546, 0.0
      %v590 = vmax.f32 %v549, 0.0
      %v591 = vmax.f32 %v552, 0.0
      %v592 = vmax.f32 %v555, 0.0
      %v593 = vmax.f32 %v558, 0.0
      %v594 = vmax.f32 %v561, 0.0
      %vm595 = vcmask 31744
      %596 = vst.msk [vmem:[#allocation2] sm:$0xff] %vm595, 0.0
      %597 = vst.msk [vmem:[#allocation2 + $0x8] sm:$0xff] %vm595, 0.0
      %598 = vst.msk [vmem:[#allocation2 + $0x10] sm:$0xff] %vm595, 0.0
      %599 = vst.msk [vmem:[#allocation2 + $0x18] sm:$0xff] %vm595, 0.0
      %600 = vst.msk [vmem:[#allocation2 + $0x20] sm:$0xff] %vm595, 0.0
      %601 = vst.msk [vmem:[#allocation2 + $0x28] sm:$0xff] %vm595, 0.0
      %602 = vst.msk [vmem:[#allocation2 + $0x30] sm:$0xff] %vm595, 0.0
      %603 = vst.msk [vmem:[#allocation2 + $0x38] sm:$0xff] %vm595, 0.0
      %604 = vst.msk [vmem:[#allocation2 + $0x40] sm:$0xff] %vm595, 0.0
      %605 = vst.msk [vmem:[#allocation2 + $0x48] sm:$0xff] %vm595, 0.0
      %606 = vst.msk [vmem:[#allocation2 + $0x50] sm:$0xff] %vm595, 0.0
      %607 = vst.msk [vmem:[#allocation2 + $0x58] sm:$0xff] %vm595, 0.0
      %608 = vst.msk [vmem:[#allocation2 + $0x60] sm:$0xff] %vm595, 0.0
      %609 = vst.msk [vmem:[#allocation2 + $0x68] sm:$0xff] %vm595, 0.0
      %610 = vst.msk [vmem:[#allocation2 + $0x70] sm:$0xff] %vm595, 0.0
      %611 = vst.msk [vmem:[#allocation2 + $0x78] sm:$0xff] %vm595, 0.0
      %612 = vst.msk [vmem:[#allocation2 + $0x80] sm:$0xff] %vm595, 0.0
      %613 = vst.msk [vmem:[#allocation2 + $0x88] sm:$0xff] %vm595, 0.0
      %614 = vst.msk [vmem:[#allocation2 + $0x90] sm:$0xff] %vm595, 0.0
      %615 = vst.msk [vmem:[#allocation2 + $0x98] sm:$0xff] %vm595, 0.0
      %616 = vst.msk [vmem:[#allocation2 + $0xa0] sm:$0xff] %vm595, 0.0
      %617 = vst.msk [vmem:[#allocation2 + $0xa8] sm:$0xff] %vm595, 0.0
      %618 = vst.msk [vmem:[#allocation2 + $0xb0] sm:$0xff] %vm595, 0.0
      %619 = vst.msk [vmem:[#allocation2 + $0xb8] sm:$0xff] %vm595, 0.0
      %620 = vst.msk [vmem:[#allocation2 + $0xc0] sm:$0xff] %vm595, 0.0
      %621 = vst.msk [vmem:[#allocation2 + $0xc8] sm:$0xff] %vm595, 0.0
      %622 = vst.msk [vmem:[#allocation2 + $0xd0] sm:$0xff] %vm595, 0.0
      %623 = vst.msk [vmem:[#allocation2 + $0xd8] sm:$0xff] %vm595, 0.0
      %624 = vst.msk [vmem:[#allocation2 + $0xe0] sm:$0xff] %vm595, 0.0
      %625 = vst.msk [vmem:[#allocation2 + $0xe8] sm:$0xff] %vm595, 0.0
      %626 = vst.msk [vmem:[#allocation2 + $0xf0] sm:$0xff] %vm595, 0.0
      %627 = vst.msk [vmem:[#allocation2 + $0xf8] sm:$0xff] %vm595, 0.0
      %628 = vst.msk [vmem:[#allocation2 + $0x100] sm:$0xff] %vm595, 0.0
      %629 = vst.msk [vmem:[#allocation2 + $0x108] sm:$0xff] %vm595, 0.0
      %630 = vst.msk [vmem:[#allocation2 + $0x110] sm:$0xff] %vm595, 0.0
      %631 = vst.msk [vmem:[#allocation2 + $0x118] sm:$0xff] %vm595, 0.0
      %632 = vst.msk [vmem:[#allocation2 + $0x120] sm:$0xff] %vm595, 0.0
      %633 = vst.msk [vmem:[#allocation2 + $0x128] sm:$0xff] %vm595, 0.0
      %634 = vst.msk [vmem:[#allocation2 + $0x130] sm:$0xff] %vm595, 0.0
      %635 = vst.msk [vmem:[#allocation2 + $0x138] sm:$0xff] %vm595, 0.0
      %636 = vst.msk [vmem:[#allocation2 + $0x140] sm:$0xff] %vm595, 0.0
      %637 = vst.msk [vmem:[#allocation2 + $0x148] sm:$0xff] %vm595, 0.0
      %638 = vst.msk [vmem:[#allocation2 + $0x150] sm:$0xff] %vm595, 0.0
      %639 = vst.msk [vmem:[#allocation2 + $0x158] sm:$0xff] %vm595, 0.0
      %640 = vst.msk [vmem:[#allocation2 + $0x160] sm:$0xff] %vm595, 0.0
      %641 = vst.msk [vmem:[#allocation2 + $0x168] sm:$0xff] %vm595, 0.0
      %642 = vst.msk [vmem:[#allocation2 + $0x170] sm:$0xff] %vm595, 0.0
      %643 = vst.msk [vmem:[#allocation2 + $0x178] sm:$0xff] %vm595, 0.0
      %644 = vst.msk [vmem:[#allocation2 + $0x180] sm:$0xff] %vm595, 0.0
      %645 = vst.msk [vmem:[#allocation2 + $0x188] sm:$0xff] %vm595, 0.0
      %646 = vst.msk [vmem:[#allocation2 + $0x190] sm:$0xff] %vm595, 0.0
      %647 = vst.msk [vmem:[#allocation2 + $0x198] sm:$0xff] %vm595, 0.0
      %648 = vst.msk [vmem:[#allocation2 + $0x1a0] sm:$0xff] %vm595, 0.0
      %649 = vst.msk [vmem:[#allocation2 + $0x1a8] sm:$0xff] %vm595, 0.0
      %650 = vst.msk [vmem:[#allocation2 + $0x1b0] sm:$0xff] %vm595, 0.0
      %651 = vst.msk [vmem:[#allocation2 + $0x1b8] sm:$0xff] %vm595, 0.0
      %652 = vst.msk [vmem:[#allocation2 + $0x1c0] sm:$0xff] %vm595, 0.0
      %653 = vst.msk [vmem:[#allocation2 + $0x1c8] sm:$0xff] %vm595, 0.0
      %654 = vst.msk [vmem:[#allocation2 + $0x1d0] sm:$0xff] %vm595, 0.0
      %655 = vst.msk [vmem:[#allocation2 + $0x1d8] sm:$0xff] %vm595, 0.0
      %656 = vst.msk [vmem:[#allocation2 + $0x1e0] sm:$0xff] %vm595, 0.0
      %657 = vst.msk [vmem:[#allocation2 + $0x1e8] sm:$0xff] %vm595, 0.0
      %658 = vst.msk [vmem:[#allocation2 + $0x1f0] sm:$0xff] %vm595, 0.0
      %659 = vst.msk [vmem:[#allocation2 + $0x1f8] sm:$0xff] %vm595, 0.0
      %660 = vst.msk [vmem:[#allocation2 + $0x200] sm:$0xff] %vm595, 0.0
      %661 = vst.msk [vmem:[#allocation2 + $0x208] sm:$0xff] %vm595, 0.0
      %662 = vst.msk [vmem:[#allocation2 + $0x210] sm:$0xff] %vm595, 0.0
      %663 = vst.msk [vmem:[#allocation2 + $0x218] sm:$0xff] %vm595, 0.0
      %664 = vst.msk [vmem:[#allocation2 + $0x220] sm:$0xff] %vm595, 0.0
      %665 = vst.msk [vmem:[#allocation2 + $0x228] sm:$0xff] %vm595, 0.0
      %666 = vst.msk [vmem:[#allocation2 + $0x230] sm:$0xff] %vm595, 0.0
      %667 = vst.msk [vmem:[#allocation2 + $0x238] sm:$0xff] %vm595, 0.0
      %s668 = scalar_lea.vmem [#allocation2], 32
      %669 = vst.msk [vmem:[%s668 + $0x8] sm:$0xff] %vm595, %v563
      %670 = vst.msk [vmem:[%s668 + $0x10] sm:$0xff] %vm595, %v564
      %671 = vst.msk [vmem:[%s668 + $0x28] sm:$0xff] %vm595, %v565
      %672 = vst.msk [vmem:[%s668 + $0x30] sm:$0xff] %vm595, %v566
      %673 = vst.msk [vmem:[%s668 + $0x48] sm:$0xff] %vm595, %v567
      %674 = vst.msk [vmem:[%s668 + $0x50] sm:$0xff] %vm595, %v568
      %675 = vst.msk [vmem:[%s668 + $0x68] sm:$0xff] %vm595, %v569
      %676 = vst.msk [vmem:[%s668 + $0x70] sm:$0xff] %vm595, %v570
      %677 = vst.msk [vmem:[%s668 + $0x88] sm:$0xff] %vm595, %v571
      %678 = vst.msk [vmem:[%s668 + $0x90] sm:$0xff] %vm595, %v572
      %679 = vst.msk [vmem:[%s668 + $0xa8] sm:$0xff] %vm595, %v573
      %680 = vst.msk [vmem:[%s668 + $0xb0] sm:$0xff] %vm595, %v574
      %681 = vst.msk [vmem:[%s668 + $0xc8] sm:$0xff] %vm595, %v575
      %682 = vst.msk [vmem:[%s668 + $0xd0] sm:$0xff] %vm595, %v576
      %683 = vst.msk [vmem:[%s668 + $0xe8] sm:$0xff] %vm595, %v577
      %684 = vst.msk [vmem:[%s668 + $0xf0] sm:$0xff] %vm595, %v578
      %685 = vst.msk [vmem:[%s668 + $0x108] sm:$0xff] %vm595, %v579
      %686 = vst.msk [vmem:[%s668 + $0x110] sm:$0xff] %vm595, %v580
      %687 = vst.msk [vmem:[%s668 + $0x128] sm:$0xff] %vm595, %v581
      %688 = vst.msk [vmem:[%s668 + $0x130] sm:$0xff] %vm595, %v582
      %689 = vst.msk [vmem:[%s668 + $0x148] sm:$0xff] %vm595, %v583
      %690 = vst.msk [vmem:[%s668 + $0x150] sm:$0xff] %vm595, %v584
      %691 = vst.msk [vmem:[%s668 + $0x168] sm:$0xff] %vm595, %v585
      %692 = vst.msk [vmem:[%s668 + $0x170] sm:$0xff] %vm595, %v586
      %693 = vst.msk [vmem:[%s668 + $0x188] sm:$0xff] %vm595, %v587
      %694 = vst.msk [vmem:[%s668 + $0x190] sm:$0xff] %vm595, %v588
      %695 = vst.msk [vmem:[%s668 + $0x1a8] sm:$0xff] %vm595, %v589
      %696 = vst.msk [vmem:[%s668 + $0x1b0] sm:$0xff] %vm595, %v590
      %697 = vst.msk [vmem:[%s668 + $0x1c8] sm:$0xff] %vm595, %v591
      %698 = vst.msk [vmem:[%s668 + $0x1d0] sm:$0xff] %vm595, %v592
      %699 = vst.msk [vmem:[%s668 + $0x1e8] sm:$0xff] %vm595, %v593
      %700 = vst.msk [vmem:[%s668 + $0x1f0] sm:$0xff] %vm595, %v594
      %v701 = vld [vmem:[#allocation2 + $0x7] sm:$0xff]
      %v702 = vld [vmem:[#allocation2 + $0xf] sm:$0xff]
      %v703 = vld [vmem:[#allocation2 + $0x27] sm:$0xff]
      %v704 = vld [vmem:[#allocation2 + $0x2f] sm:$0xff]
      %v705 = vld [vmem:[#allocation2 + $0x47] sm:$0xff]
      %v706 = vld [vmem:[#allocation2 + $0x4f] sm:$0xff]
      %v707 = vld [vmem:[#allocation2 + $0x67] sm:$0xff]
      %v708 = vld [vmem:[#allocation2 + $0x6f] sm:$0xff]
      %v709 = vld [vmem:[#allocation2 + $0x87] sm:$0xff]
      %v710 = vld [vmem:[#allocation2 + $0x8f] sm:$0xff]
      %v711 = vld [vmem:[#allocation2 + $0xa7] sm:$0xff]
      %v712 = vld [vmem:[#allocation2 + $0xaf] sm:$0xff]
      %v713 = vld [vmem:[#allocation2 + $0xc7] sm:$0xff]
      %v714 = vld [vmem:[#allocation2 + $0xcf] sm:$0xff]
      %v715 = vld [vmem:[#allocation2 + $0xe7] sm:$0xff]
      %v716 = vld [vmem:[#allocation2 + $0xef] sm:$0xff]
      %v717 = vld [vmem:[#allocation2 + $0x107] sm:$0xff]
      %v718 = vld [vmem:[#allocation2 + $0x10f] sm:$0xff]
      %v719 = vld [vmem:[#allocation2 + $0x127] sm:$0xff]
      %v720 = vld [vmem:[#allocation2 + $0x12f] sm:$0xff]
      %v721 = vld [vmem:[#allocation2 + $0x147] sm:$0xff]
      %v722 = vld [vmem:[#allocation2 + $0x14f] sm:$0xff]
      %v723 = vld [vmem:[#allocation2 + $0x167] sm:$0xff]
      %v724 = vld [vmem:[#allocation2 + $0x16f] sm:$0xff]
      %v725 = vld [vmem:[#allocation2 + $0x187] sm:$0xff]
      %v726 = vld [vmem:[#allocation2 + $0x18f] sm:$0xff]
      %v727 = vld [vmem:[#allocation2 + $0x1a7] sm:$0xff]
      %v728 = vld [vmem:[#allocation2 + $0x1af] sm:$0xff]
      %v729 = vld [vmem:[#allocation2 + $0x1c7] sm:$0xff]
      %v730 = vld [vmem:[#allocation2 + $0x1cf] sm:$0xff]
      %v731 = vld [vmem:[#allocation2 + $0x1e7] sm:$0xff]
      %v732 = vld [vmem:[#allocation2 + $0x1ef] sm:$0xff]
      %v733 = vld [vmem:[%s2] sm:$0xf]
      %v734 = vld [vmem:[#allocation2 + $0x8] sm:$0xff]
      %v735 = vld [vmem:[#allocation2 + $0x10] sm:$0xff]
      %v736 = vld [vmem:[#allocation2 + $0x28] sm:$0xff]
      %v737 = vld [vmem:[#allocation2 + $0x30] sm:$0xff]
      %v738 = vld [vmem:[#allocation2 + $0x48] sm:$0xff]
      %v739 = vld [vmem:[#allocation2 + $0x50] sm:$0xff]
      %v740 = vld [vmem:[#allocation2 + $0x68] sm:$0xff]
      %v741 = vld [vmem:[#allocation2 + $0x70] sm:$0xff]
      %v742 = vld [vmem:[#allocation2 + $0x88] sm:$0xff]
      %v743 = vld [vmem:[#allocation2 + $0x90] sm:$0xff]
      %v744 = vld [vmem:[#allocation2 + $0xa8] sm:$0xff]
      %v745 = vld [vmem:[#allocation2 + $0xb0] sm:$0xff]
      %v746 = vld [vmem:[#allocation2 + $0xc8] sm:$0xff]
      %v747 = vld [vmem:[#allocation2 + $0xd0] sm:$0xff]
      %v748 = vld [vmem:[#allocation2 + $0xe8] sm:$0xff]
      %v749 = vld [vmem:[#allocation2 + $0xf0] sm:$0xff]
      %v750 = vld [vmem:[#allocation2 + $0x108] sm:$0xff]
      %v751 = vld [vmem:[#allocation2 + $0x110] sm:$0xff]
      %v752 = vld [vmem:[#allocation2 + $0x128] sm:$0xff]
      %v753 = vld [vmem:[#allocation2 + $0x130] sm:$0xff]
      %v754 = vld [vmem:[#allocation2 + $0x148] sm:$0xff]
      %v755 = vld [vmem:[#allocation2 + $0x150] sm:$0xff]
      %v756 = vld [vmem:[#allocation2 + $0x168] sm:$0xff]
      %v757 = vld [vmem:[#allocation2 + $0x170] sm:$0xff]
      %v758 = vld [vmem:[#allocation2 + $0x188] sm:$0xff]
      %v759 = vld [vmem:[#allocation2 + $0x190] sm:$0xff]
      %v760 = vld [vmem:[#allocation2 + $0x1a8] sm:$0xff]
      %v761 = vld [vmem:[#allocation2 + $0x1b0] sm:$0xff]
      %v762 = vld [vmem:[#allocation2 + $0x1c8] sm:$0xff]
      %v763 = vld [vmem:[#allocation2 + $0x1d0] sm:$0xff]
      %v764 = vld [vmem:[#allocation2 + $0x1e8] sm:$0xff]
      %v765 = vld [vmem:[#allocation2 + $0x1f0] sm:$0xff]
      %s766 = scalar_lea.vmem %s2, 4
      %v767 = vld [vmem:[%s766] sm:$0xf]
      %v769 = vsel %vm595, %v767, 0
      %v772 = vsel %vm595, %v734, 0
      %v775 = vsel %vm595, %v735, 0
      %v778 = vsel %vm595, %v736, 0
      %v781 = vsel %vm595, %v737, 0
      %v784 = vsel %vm595, %v738, 0
      %v787 = vsel %vm595, %v739, 0
      %v790 = vsel %vm595, %v740, 0
      %v793 = vsel %vm595, %v741, 0
      %v796 = vsel %vm595, %v742, 0
      %v799 = vsel %vm595, %v743, 0
      %v802 = vsel %vm595, %v744, 0
      %v805 = vsel %vm595, %v745, 0
      %v808 = vsel %vm595, %v746, 0
      %v811 = vsel %vm595, %v747, 0
      %v814 = vsel %vm595, %v748, 0
      %v817 = vsel %vm595, %v749, 0
      %v820 = vsel %vm595, %v750, 0
      %v823 = vsel %vm595, %v751, 0
      %v826 = vsel %vm595, %v752, 0
      %v829 = vsel %vm595, %v753, 0
      %v832 = vsel %vm595, %v754, 0
      %v835 = vsel %vm595, %v755, 0
      %v838 = vsel %vm595, %v756, 0
      %v841 = vsel %vm595, %v757, 0
      %v844 = vsel %vm595, %v758, 0
      %v847 = vsel %vm595, %v759, 0
      %v850 = vsel %vm595, %v760, 0
      %v853 = vsel %vm595, %v761, 0
      %v856 = vsel %vm595, %v762, 0
      %v859 = vsel %vm595, %v763, 0
      %v862 = vsel %vm595, %v764, 0
      %v865 = vsel %vm595, %v765, 0
      %867 = vmatpush.xpose.msra.mxu0 %v817
      %868 = vmatpush.xpose.msra.mxu0 %v814
      %869 = vmatpush.xpose.msra.mxu0 %v811
      %870 = vmatpush.xpose.msra.mxu0 %v808
      %871 = vmatpush.xpose.msra.mxu0 %v805
      %872 = vmatpush.xpose.msra.mxu0 %v802
      %873 = vmatpush.xpose.msra.mxu0 %v799
      %874 = vmatpush.xpose.msra.mxu0 %v796
      %875 = vmatpush.xpose.msra.mxu0 %v793
      %876 = vmatpush.xpose.msra.mxu0 %v790
      %877 = vmatpush.xpose.msra.mxu0 %v787
      %878 = vmatpush.xpose.msra.mxu0 %v784
      %879 = vmatpush.xpose.msra.mxu0 %v781
      %880 = vmatpush.xpose.msra.mxu0 %v778
      %881 = vmatpush.xpose.msra.mxu0 %v775
      %882 = vmatpush.xpose.msra.mxu0 %v772
      %883 = vmatmul.f32.gmra.mxu0 %v769
      %v884 = vpop.f32.mrf.mxu0
      %v885 = vadd.f32 0.0, %v884
      %886 = vdwg.mxu0
      %887 = vmatpush.xpose.msra.mxu0 %v865
      %888 = vmatpush.xpose.msra.mxu0 %v862
      %889 = vmatpush.xpose.msra.mxu0 %v859
      %890 = vmatpush.xpose.msra.mxu0 %v856
      %891 = vmatpush.xpose.msra.mxu0 %v853
      %892 = vmatpush.xpose.msra.mxu0 %v850
      %893 = vmatpush.xpose.msra.mxu0 %v847
      %894 = vmatpush.xpose.msra.mxu0 %v844
      %895 = vmatpush.xpose.msra.mxu0 %v841
      %896 = vmatpush.xpose.msra.mxu0 %v838
      %897 = vmatpush.xpose.msra.mxu0 %v835
      %898 = vmatpush.xpose.msra.mxu0 %v832
      %899 = vmatpush.xpose.msra.mxu0 %v829
      %900 = vmatpush.xpose.msra.mxu0 %v826
      %901 = vmatpush.xpose.msra.mxu0 %v823
      %902 = vmatpush.xpose.msra.mxu0 %v820
      %903 = vmatmul.f32.gmra.mxu0 %v769
      %v904 = vpop.f32.mrf.mxu0
      %v905 = vadd.f32 0.0, %v904
      %906 = vdwg.mxu0
      %v908 = vsel %vm595, %v733, 0
      %v911 = vsel %vm595, %v701, 0
      %v914 = vsel %vm595, %v702, 0
      %v917 = vsel %vm595, %v703, 0
      %v920 = vsel %vm595, %v704, 0
      %v923 = vsel %vm595, %v705, 0
      %v926 = vsel %vm595, %v706, 0
      %v929 = vsel %vm595, %v707, 0
      %v932 = vsel %vm595, %v708, 0
      %v935 = vsel %vm595, %v709, 0
      %v938 = vsel %vm595, %v710, 0
      %v941 = vsel %vm595, %v711, 0
      %v944 = vsel %vm595, %v712, 0
      %v947 = vsel %vm595, %v713, 0
      %v950 = vsel %vm595, %v714, 0
      %v953 = vsel %vm595, %v715, 0
      %v956 = vsel %vm595, %v716, 0
      %v959 = vsel %vm595, %v717, 0
      %v962 = vsel %vm595, %v718, 0
      %v965 = vsel %vm595, %v719, 0
      %v968 = vsel %vm595, %v720, 0
      %v971 = vsel %vm595, %v721, 0
      %v974 = vsel %vm595, %v722, 0
      %v977 = vsel %vm595, %v723, 0
      %v980 = vsel %vm595, %v724, 0
      %v983 = vsel %vm595, %v725, 0
      %v986 = vsel %vm595, %v726, 0
      %v989 = vsel %vm595, %v727, 0
      %v992 = vsel %vm595, %v728, 0
      %v995 = vsel %vm595, %v729, 0
      %v998 = vsel %vm595, %v730, 0
      %v1001 = vsel %vm595, %v731, 0
      %v1004 = vsel %vm595, %v732, 0
      %1006 = vmatpush.xpose.msra.mxu0 %v956
      %1007 = vmatpush.xpose.msra.mxu0 %v953
      %1008 = vmatpush.xpose.msra.mxu0 %v950
      %1009 = vmatpush.xpose.msra.mxu0 %v947
      %1010 = vmatpush.xpose.msra.mxu0 %v944
      %1011 = vmatpush.xpose.msra.mxu0 %v941
      %1012 = vmatpush.xpose.msra.mxu0 %v938
      %1013 = vmatpush.xpose.msra.mxu0 %v935
      %1014 = vmatpush.xpose.msra.mxu0 %v932
      %1015 = vmatpush.xpose.msra.mxu0 %v929
      %1016 = vmatpush.xpose.msra.mxu0 %v926
      %1017 = vmatpush.xpose.msra.mxu0 %v923
      %1018 = vmatpush.xpose.msra.mxu0 %v920
      %1019 = vmatpush.xpose.msra.mxu0 %v917
      %1020 = vmatpush.xpose.msra.mxu0 %v914
      %1021 = vmatpush.xpose.msra.mxu0 %v911
      %1022 = vmatmul.f32.gmra.mxu0 %v908
      %v1023 = vpop.f32.mrf.mxu0
      %v1024 = vadd.f32 %v885, %v1023
      %1025 = vdwg.mxu0
      %1026 = vmatpush.xpose.msra.mxu0 %v1004
      %1027 = vmatpush.xpose.msra.mxu0 %v1001
      %1028 = vmatpush.xpose.msra.mxu0 %v998
      %1029 = vmatpush.xpose.msra.mxu0 %v995
      %1030 = vmatpush.xpose.msra.mxu0 %v992
      %1031 = vmatpush.xpose.msra.mxu0 %v989
      %1032 = vmatpush.xpose.msra.mxu0 %v986
      %1033 = vmatpush.xpose.msra.mxu0 %v983
      %1034 = vmatpush.xpose.msra.mxu0 %v980
      %1035 = vmatpush.xpose.msra.mxu0 %v977
      %1036 = vmatpush.xpose.msra.mxu0 %v974
      %1037 = vmatpush.xpose.msra.mxu0 %v971
      %1038 = vmatpush.xpose.msra.mxu0 %v968
      %1039 = vmatpush.xpose.msra.mxu0 %v965
      %1040 = vmatpush.xpose.msra.mxu0 %v962
      %1041 = vmatpush.xpose.msra.mxu0 %v959
      %1042 = vmatmul.f32.gmra.mxu0 %v908
      %v1043 = vpop.f32.mrf.mxu0
      %v1044 = vadd.f32 %v905, %v1043
      %1045 = vdwg.mxu0
      %v1046 = vld [vmem:[#allocation2 + $0x9] sm:$0xff]
      %v1047 = vld [vmem:[#allocation2 + $0x11] sm:$0xff]
      %v1048 = vld [vmem:[#allocation2 + $0x29] sm:$0xff]
      %v1049 = vld [vmem:[#allocation2 + $0x31] sm:$0xff]
      %v1050 = vld [vmem:[#allocation2 + $0x49] sm:$0xff]
      %v1051 = vld [vmem:[#allocation2 + $0x51] sm:$0xff]
      %v1052 = vld [vmem:[#allocation2 + $0x69] sm:$0xff]
      %v1053 = vld [vmem:[#allocation2 + $0x71] sm:$0xff]
      %v1054 = vld [vmem:[#allocation2 + $0x89] sm:$0xff]
      %v1055 = vld [vmem:[#allocation2 + $0x91] sm:$0xff]
      %v1056 = vld [vmem:[#allocation2 + $0xa9] sm:$0xff]
      %v1057 = vld [vmem:[#allocation2 + $0xb1] sm:$0xff]
      %v1058 = vld [vmem:[#allocation2 + $0xc9] sm:$0xff]
      %v1059 = vld [vmem:[#allocation2 + $0xd1] sm:$0xff]
      %v1060 = vld [vmem:[#allocation2 + $0xe9] sm:$0xff]
      %v1061 = vld [vmem:[#allocation2 + $0xf1] sm:$0xff]
      %v1062 = vld [vmem:[#allocation2 + $0x109] sm:$0xff]
      %v1063 = vld [vmem:[#allocation2 + $0x111] sm:$0xff]
      %v1064 = vld [vmem:[#allocation2 + $0x129] sm:$0xff]
      %v1065 = vld [vmem:[#allocation2 + $0x131] sm:$0xff]
      %v1066 = vld [vmem:[#allocation2 + $0x149] sm:$0xff]
      %v1067 = vld [vmem:[#allocation2 + $0x151] sm:$0xff]
      %v1068 = vld [vmem:[#allocation2 + $0x169] sm:$0xff]
      %v1069 = vld [vmem:[#allocation2 + $0x171] sm:$0xff]
      %v1070 = vld [vmem:[#allocation2 + $0x189] sm:$0xff]
      %v1071 = vld [vmem:[#allocation2 + $0x191] sm:$0xff]
      %v1072 = vld [vmem:[#allocation2 + $0x1a9] sm:$0xff]
      %v1073 = vld [vmem:[#allocation2 + $0x1b1] sm:$0xff]
      %v1074 = vld [vmem:[#allocation2 + $0x1c9] sm:$0xff]
      %v1075 = vld [vmem:[#allocation2 + $0x1d1] sm:$0xff]
      %v1076 = vld [vmem:[#allocation2 + $0x1e9] sm:$0xff]
      %v1077 = vld [vmem:[#allocation2 + $0x1f1] sm:$0xff]
      %s1078 = scalar_lea.vmem %s2, 8
      %v1079 = vld [vmem:[%s1078] sm:$0xf]
      %v1081 = vsel %vm595, %v1079, 0
      %v1084 = vsel %vm595, %v1046, 0
      %v1087 = vsel %vm595, %v1047, 0
      %v1090 = vsel %vm595, %v1048, 0
      %v1093 = vsel %vm595, %v1049, 0
      %v1096 = vsel %vm595, %v1050, 0
      %v1099 = vsel %vm595, %v1051, 0
      %v1102 = vsel %vm595, %v1052, 0
      %v1105 = vsel %vm595, %v1053, 0
      %v1108 = vsel %vm595, %v1054, 0
      %v1111 = vsel %vm595, %v1055, 0
      %v1114 = vsel %vm595, %v1056, 0
      %v1117 = vsel %vm595, %v1057, 0
      %v1120 = vsel %vm595, %v1058, 0
      %v1123 = vsel %vm595, %v1059, 0
      %v1126 = vsel %vm595, %v1060, 0
      %v1129 = vsel %vm595, %v1061, 0
      %v1132 = vsel %vm595, %v1062, 0
      %v1135 = vsel %vm595, %v1063, 0
      %v1138 = vsel %vm595, %v1064, 0
      %v1141 = vsel %vm595, %v1065, 0
      %v1144 = vsel %vm595, %v1066, 0
      %v1147 = vsel %vm595, %v1067, 0
      %v1150 = vsel %vm595, %v1068, 0
      %v1153 = vsel %vm595, %v1069, 0
      %v1156 = vsel %vm595, %v1070, 0
      %v1159 = vsel %vm595, %v1071, 0
      %v1162 = vsel %vm595, %v1072, 0
      %v1165 = vsel %vm595, %v1073, 0
      %v1168 = vsel %vm595, %v1074, 0
      %v1171 = vsel %vm595, %v1075, 0
      %v1174 = vsel %vm595, %v1076, 0
      %v1177 = vsel %vm595, %v1077, 0
      %1179 = vmatpush.xpose.msra.mxu0 %v1129
      %1180 = vmatpush.xpose.msra.mxu0 %v1126
      %1181 = vmatpush.xpose.msra.mxu0 %v1123
      %1182 = vmatpush.xpose.msra.mxu0 %v1120
      %1183 = vmatpush.xpose.msra.mxu0 %v1117
      %1184 = vmatpush.xpose.msra.mxu0 %v1114
      %1185 = vmatpush.xpose.msra.mxu0 %v1111
      %1186 = vmatpush.xpose.msra.mxu0 %v1108
      %1187 = vmatpush.xpose.msra.mxu0 %v1105
      %1188 = vmatpush.xpose.msra.mxu0 %v1102
      %1189 = vmatpush.xpose.msra.mxu0 %v1099
      %1190 = vmatpush.xpose.msra.mxu0 %v1096
      %1191 = vmatpush.xpose.msra.mxu0 %v1093
      %1192 = vmatpush.xpose.msra.mxu0 %v1090
      %1193 = vmatpush.xpose.msra.mxu0 %v1087
      %1194 = vmatpush.xpose.msra.mxu0 %v1084
      %1195 = vmatmul.f32.gmra.mxu0 %v1081
      %v1196 = vpop.f32.mrf.mxu0
      %v1197 = vadd.f32 0.0, %v1196
      %1198 = vdwg.mxu0
      %1199 = vmatpush.xpose.msra.mxu0 %v1177
      %1200 = vmatpush.xpose.msra.mxu0 %v1174
      %1201 = vmatpush.xpose.msra.mxu0 %v1171
      %1202 = vmatpush.xpose.msra.mxu0 %v1168
      %1203 = vmatpush.xpose.msra.mxu0 %v1165
      %1204 = vmatpush.xpose.msra.mxu0 %v1162
      %1205 = vmatpush.xpose.msra.mxu0 %v1159
      %1206 = vmatpush.xpose.msra.mxu0 %v1156
      %1207 = vmatpush.xpose.msra.mxu0 %v1153
      %1208 = vmatpush.xpose.msra.mxu0 %v1150
      %1209 = vmatpush.xpose.msra.mxu0 %v1147
      %1210 = vmatpush.xpose.msra.mxu0 %v1144
      %1211 = vmatpush.xpose.msra.mxu0 %v1141
      %1212 = vmatpush.xpose.msra.mxu0 %v1138
      %1213 = vmatpush.xpose.msra.mxu0 %v1135
      %1214 = vmatpush.xpose.msra.mxu0 %v1132
      %1215 = vmatmul.f32.gmra.mxu0 %v1081
      %v1216 = vpop.f32.mrf.mxu0
      %v1217 = vadd.f32 0.0, %v1216
      %1218 = vdwg.mxu0
      %v1219 = vadd.f32 %v1024, %v1197
      %v1220 = vadd.f32 %v1044, %v1217
      %v1221 = vld [vmem:[%s668 + $0x7] sm:$0xff]
      %v1222 = vld [vmem:[%s668 + $0xf] sm:$0xff]
      %v1223 = vld [vmem:[%s668 + $0x27] sm:$0xff]
      %v1224 = vld [vmem:[%s668 + $0x2f] sm:$0xff]
      %v1225 = vld [vmem:[%s668 + $0x47] sm:$0xff]
      %v1226 = vld [vmem:[%s668 + $0x4f] sm:$0xff]
      %v1227 = vld [vmem:[%s668 + $0x67] sm:$0xff]
      %v1228 = vld [vmem:[%s668 + $0x6f] sm:$0xff]
      %v1229 = vld [vmem:[%s668 + $0x87] sm:$0xff]
      %v1230 = vld [vmem:[%s668 + $0x8f] sm:$0xff]
      %v1231 = vld [vmem:[%s668 + $0xa7] sm:$0xff]
      %v1232 = vld [vmem:[%s668 + $0xaf] sm:$0xff]
      %v1233 = vld [vmem:[%s668 + $0xc7] sm:$0xff]
      %v1234 = vld [vmem:[%s668 + $0xcf] sm:$0xff]
      %v1235 = vld [vmem:[%s668 + $0xe7] sm:$0xff]
      %v1236 = vld [vmem:[%s668 + $0xef] sm:$0xff]
      %v1237 = vld [vmem:[%s668 + $0x107] sm:$0xff]
      %v1238 = vld [vmem:[%s668 + $0x10f] sm:$0xff]
      %v1239 = vld [vmem:[%s668 + $0x127] sm:$0xff]
      %v1240 = vld [vmem:[%s668 + $0x12f] sm:$0xff]
      %v1241 = vld [vmem:[%s668 + $0x147] sm:$0xff]
      %v1242 = vld [vmem:[%s668 + $0x14f] sm:$0xff]
      %v1243 = vld [vmem:[%s668 + $0x167] sm:$0xff]
      %v1244 = vld [vmem:[%s668 + $0x16f] sm:$0xff]
      %v1245 = vld [vmem:[%s668 + $0x187] sm:$0xff]
      %v1246 = vld [vmem:[%s668 + $0x18f] sm:$0xff]
      %v1247 = vld [vmem:[%s668 + $0x1a7] sm:$0xff]
      %v1248 = vld [vmem:[%s668 + $0x1af] sm:$0xff]
      %v1249 = vld [vmem:[%s668 + $0x1c7] sm:$0xff]
      %v1250 = vld [vmem:[%s668 + $0x1cf] sm:$0xff]
      %v1251 = vld [vmem:[%s668 + $0x1e7] sm:$0xff]
      %v1252 = vld [vmem:[%s668 + $0x1ef] sm:$0xff]
      %s1253 = scalar_lea.vmem %s2, 12
      %v1254 = vld [vmem:[%s1253] sm:$0xf]
      %v1256 = vsel %vm595, %v1254, 0
      %v1259 = vsel %vm595, %v1221, 0
      %v1262 = vsel %vm595, %v1222, 0
      %v1265 = vsel %vm595, %v1223, 0
      %v1268 = vsel %vm595, %v1224, 0
      %v1271 = vsel %vm595, %v1225, 0
      %v1274 = vsel %vm595, %v1226, 0
      %v1277 = vsel %vm595, %v1227, 0
      %v1280 = vsel %vm595, %v1228, 0
      %v1283 = vsel %vm595, %v1229, 0
      %v1286 = vsel %vm595, %v1230, 0
      %v1289 = vsel %vm595, %v1231, 0
      %v1292 = vsel %vm595, %v1232, 0
      %v1295 = vsel %vm595, %v1233, 0
      %v1298 = vsel %vm595, %v1234, 0
      %v1301 = vsel %vm595, %v1235, 0
      %v1304 = vsel %vm595, %v1236, 0
      %v1307 = vsel %vm595, %v1237, 0
      %v1310 = vsel %vm595, %v1238, 0
      %v1313 = vsel %vm595, %v1239, 0
      %v1316 = vsel %vm595, %v1240, 0
      %v1319 = vsel %vm595, %v1241, 0
      %v1322 = vsel %vm595, %v1242, 0
      %v1325 = vsel %vm595, %v1243, 0
      %v1328 = vsel %vm595, %v1244, 0
      %v1331 = vsel %vm595, %v1245, 0
      %v1334 = vsel %vm595, %v1246, 0
      %v1337 = vsel %vm595, %v1247, 0
      %v1340 = vsel %vm595, %v1248, 0
      %v1343 = vsel %vm595, %v1249, 0
      %v1346 = vsel %vm595, %v1250, 0
      %v1349 = vsel %vm595, %v1251, 0
      %v1352 = vsel %vm595, %v1252, 0
      %1354 = vmatpush.xpose.msra.mxu0 %v1304
      %1355 = vmatpush.xpose.msra.mxu0 %v1301
      %1356 = vmatpush.xpose.msra.mxu0 %v1298
      %1357 = vmatpush.xpose.msra.mxu0 %v1295
      %1358 = vmatpush.xpose.msra.mxu0 %v1292
      %1359 = vmatpush.xpose.msra.mxu0 %v1289
      %1360 = vmatpush.xpose.msra.mxu0 %v1286
      %1361 = vmatpush.xpose.msra.mxu0 %v1283
      %1362 = vmatpush.xpose.msra.mxu0 %v1280
      %1363 = vmatpush.xpose.msra.mxu0 %v1277
      %1364 = vmatpush.xpose.msra.mxu0 %v1274
      %1365 = vmatpush.xpose.msra.mxu0 %v1271
      %1366 = vmatpush.xpose.msra.mxu0 %v1268
      %1367 = vmatpush.xpose.msra.mxu0 %v1265
      %1368 = vmatpush.xpose.msra.mxu0 %v1262
      %1369 = vmatpush.xpose.msra.mxu0 %v1259
      %1370 = vmatmul.f32.gmra.mxu0 %v1256
      %v1371 = vpop.f32.mrf.mxu0
      %v1372 = vadd.f32 0.0, %v1371
      %1373 = vdwg.mxu0
      %1374 = vmatpush.xpose.msra.mxu0 %v1352
      %1375 = vmatpush.xpose.msra.mxu0 %v1349
      %1376 = vmatpush.xpose.msra.mxu0 %v1346
      %1377 = vmatpush.xpose.msra.mxu0 %v1343
      %1378 = vmatpush.xpose.msra.mxu0 %v1340
      %1379 = vmatpush.xpose.msra.mxu0 %v1337
      %1380 = vmatpush.xpose.msra.mxu0 %v1334
      %1381 = vmatpush.xpose.msra.mxu0 %v1331
      %1382 = vmatpush.xpose.msra.mxu0 %v1328
      %1383 = vmatpush.xpose.msra.mxu0 %v1325
      %1384 = vmatpush.xpose.msra.mxu0 %v1322
      %1385 = vmatpush.xpose.msra.mxu0 %v1319
      %1386 = vmatpush.xpose.msra.mxu0 %v1316
      %1387 = vmatpush.xpose.msra.mxu0 %v1313
      %1388 = vmatpush.xpose.msra.mxu0 %v1310
      %1389 = vmatpush.xpose.msra.mxu0 %v1307
      %1390 = vmatmul.f32.gmra.mxu0 %v1256
      %v1391 = vpop.f32.mrf.mxu0
      %v1392 = vadd.f32 0.0, %v1391
      %1393 = vdwg.mxu0
      %v1394 = vadd.f32 %v1219, %v1372
      %v1395 = vadd.f32 %v1220, %v1392
      %v1396 = vld [vmem:[%s668 + $0x8] sm:$0xff]
      %v1397 = vld [vmem:[%s668 + $0x10] sm:$0xff]
      %v1398 = vld [vmem:[%s668 + $0x28] sm:$0xff]
      %v1399 = vld [vmem:[%s668 + $0x30] sm:$0xff]
      %v1400 = vld [vmem:[%s668 + $0x48] sm:$0xff]
      %v1401 = vld [vmem:[%s668 + $0x50] sm:$0xff]
      %v1402 = vld [vmem:[%s668 + $0x68] sm:$0xff]
      %v1403 = vld [vmem:[%s668 + $0x70] sm:$0xff]
      %v1404 = vld [vmem:[%s668 + $0x88] sm:$0xff]
      %v1405 = vld [vmem:[%s668 + $0x90] sm:$0xff]
      %v1406 = vld [vmem:[%s668 + $0xa8] sm:$0xff]
      %v1407 = vld [vmem:[%s668 + $0xb0] sm:$0xff]
      %v1408 = vld [vmem:[%s668 + $0xc8] sm:$0xff]
      %v1409 = vld [vmem:[%s668 + $0xd0] sm:$0xff]
      %v1410 = vld [vmem:[%s668 + $0xe8] sm:$0xff]
      %v1411 = vld [vmem:[%s668 + $0xf0] sm:$0xff]
      %v1412 = vld [vmem:[%s668 + $0x108] sm:$0xff]
      %v1413 = vld [vmem:[%s668 + $0x110] sm:$0xff]
      %v1414 = vld [vmem:[%s668 + $0x128] sm:$0xff]
      %v1415 = vld [vmem:[%s668 + $0x130] sm:$0xff]
      %v1416 = vld [vmem:[%s668 + $0x148] sm:$0xff]
      %v1417 = vld [vmem:[%s668 + $0x150] sm:$0xff]
      %v1418 = vld [vmem:[%s668 + $0x168] sm:$0xff]
      %v1419 = vld [vmem:[%s668 + $0x170] sm:$0xff]
      %v1420 = vld [vmem:[%s668 + $0x188] sm:$0xff]
      %v1421 = vld [vmem:[%s668 + $0x190] sm:$0xff]
      %v1422 = vld [vmem:[%s668 + $0x1a8] sm:$0xff]
      %v1423 = vld [vmem:[%s668 + $0x1b0] sm:$0xff]
      %v1424 = vld [vmem:[%s668 + $0x1c8] sm:$0xff]
      %v1425 = vld [vmem:[%s668 + $0x1d0] sm:$0xff]
      %v1426 = vld [vmem:[%s668 + $0x1e8] sm:$0xff]
      %v1427 = vld [vmem:[%s668 + $0x1f0] sm:$0xff]
      %s1428 = scalar_lea.vmem %s2, 16
      %v1429 = vld [vmem:[%s1428] sm:$0xf]
      %v1431 = vsel %vm595, %v1429, 0
      %v1434 = vsel %vm595, %v1396, 0
      %v1437 = vsel %vm595, %v1397, 0
      %v1440 = vsel %vm595, %v1398, 0
      %v1443 = vsel %vm595, %v1399, 0
      %v1446 = vsel %vm595, %v1400, 0
      %v1449 = vsel %vm595, %v1401, 0
      %v1452 = vsel %vm595, %v1402, 0
      %v1455 = vsel %vm595, %v1403, 0
      %v1458 = vsel %vm595, %v1404, 0
      %v1461 = vsel %vm595, %v1405, 0
      %v1464 = vsel %vm595, %v1406, 0
      %v1467 = vsel %vm595, %v1407, 0
      %v1470 = vsel %vm595, %v1408, 0
      %v1473 = vsel %vm595, %v1409, 0
      %v1476 = vsel %vm595, %v1410, 0
      %v1479 = vsel %vm595, %v1411, 0
      %v1482 = vsel %vm595, %v1412, 0
      %v1485 = vsel %vm595, %v1413, 0
      %v1488 = vsel %vm595, %v1414, 0
      %v1491 = vsel %vm595, %v1415, 0
      %v1494 = vsel %vm595, %v1416, 0
      %v1497 = vsel %vm595, %v1417, 0
      %v1500 = vsel %vm595, %v1418, 0
      %v1503 = vsel %vm595, %v1419, 0
      %v1506 = vsel %vm595, %v1420, 0
      %v1509 = vsel %vm595, %v1421, 0
      %v1512 = vsel %vm595, %v1422, 0
      %v1515 = vsel %vm595, %v1423, 0
      %v1518 = vsel %vm595, %v1424, 0
      %v1521 = vsel %vm595, %v1425, 0
      %v1524 = vsel %vm595, %v1426, 0
      %v1527 = vsel %vm595, %v1427, 0
      %1529 = vmatpush.xpose.msra.mxu0 %v1479
      %1530 = vmatpush.xpose.msra.mxu0 %v1476
      %1531 = vmatpush.xpose.msra.mxu0 %v1473
      %1532 = vmatpush.xpose.msra.mxu0 %v1470
      %1533 = vmatpush.xpose.msra.mxu0 %v1467
      %1534 = vmatpush.xpose.msra.mxu0 %v1464
      %1535 = vmatpush.xpose.msra.mxu0 %v1461
      %1536 = vmatpush.xpose.msra.mxu0 %v1458
      %1537 = vmatpush.xpose.msra.mxu0 %v1455
      %1538 = vmatpush.xpose.msra.mxu0 %v1452
      %1539 = vmatpush.xpose.msra.mxu0 %v1449
      %1540 = vmatpush.xpose.msra.mxu0 %v1446
      %1541 = vmatpush.xpose.msra.mxu0 %v1443
      %1542 = vmatpush.xpose.msra.mxu0 %v1440
      %1543 = vmatpush.xpose.msra.mxu0 %v1437
      %1544 = vmatpush.xpose.msra.mxu0 %v1434
      %1545 = vmatmul.f32.gmra.mxu0 %v1431
      %v1546 = vpop.f32.mrf.mxu0
      %v1547 = vadd.f32 0.0, %v1546
      %1548 = vdwg.mxu0
      %1549 = vmatpush.xpose.msra.mxu0 %v1527
      %1550 = vmatpush.xpose.msra.mxu0 %v1524
      %1551 = vmatpush.xpose.msra.mxu0 %v1521
      %1552 = vmatpush.xpose.msra.mxu0 %v1518
      %1553 = vmatpush.xpose.msra.mxu0 %v1515
      %1554 = vmatpush.xpose.msra.mxu0 %v1512
      %1555 = vmatpush.xpose.msra.mxu0 %v1509
      %1556 = vmatpush.xpose.msra.mxu0 %v1506
      %1557 = vmatpush.xpose.msra.mxu0 %v1503
      %1558 = vmatpush.xpose.msra.mxu0 %v1500
      %1559 = vmatpush.xpose.msra.mxu0 %v1497
      %1560 = vmatpush.xpose.msra.mxu0 %v1494
      %1561 = vmatpush.xpose.msra.mxu0 %v1491
      %1562 = vmatpush.xpose.msra.mxu0 %v1488
      %1563 = vmatpush.xpose.msra.mxu0 %v1485
      %1564 = vmatpush.xpose.msra.mxu0 %v1482
      %1565 = vmatmul.f32.gmra.mxu0 %v1431
      %v1566 = vpop.f32.mrf.mxu0
      %v1567 = vadd.f32 0.0, %v1566
      %1568 = vdwg.mxu0
      %v1569 = vadd.f32 %v1394, %v1547
      %v1570 = vadd.f32 %v1395, %v1567
      %v1571 = vld [vmem:[%s668 + $0x9] sm:$0xff]
      %v1572 = vld [vmem:[%s668 + $0x11] sm:$0xff]
      %v1573 = vld [vmem:[%s668 + $0x29] sm:$0xff]
      %v1574 = vld [vmem:[%s668 + $0x31] sm:$0xff]
      %v1575 = vld [vmem:[%s668 + $0x49] sm:$0xff]
      %v1576 = vld [vmem:[%s668 + $0x51] sm:$0xff]
      %v1577 = vld [vmem:[%s668 + $0x69] sm:$0xff]
      %v1578 = vld [vmem:[%s668 + $0x71] sm:$0xff]
      %v1579 = vld [vmem:[%s668 + $0x89] sm:$0xff]
      %v1580 = vld [vmem:[%s668 + $0x91] sm:$0xff]
      %v1581 = vld [vmem:[%s668 + $0xa9] sm:$0xff]
      %v1582 = vld [vmem:[%s668 + $0xb1] sm:$0xff]
      %v1583 = vld [vmem:[%s668 + $0xc9] sm:$0xff]
      %v1584 = vld [vmem:[%s668 + $0xd1] sm:$0xff]
      %v1585 = vld [vmem:[%s668 + $0xe9] sm:$0xff]
      %v1586 = vld [vmem:[%s668 + $0xf1] sm:$0xff]
      %v1587 = vld [vmem:[%s668 + $0x109] sm:$0xff]
      %v1588 = vld [vmem:[%s668 + $0x111] sm:$0xff]
      %v1589 = vld [vmem:[%s668 + $0x129] sm:$0xff]
      %v1590 = vld [vmem:[%s668 + $0x131] sm:$0xff]
      %v1591 = vld [vmem:[%s668 + $0x149] sm:$0xff]
      %v1592 = vld [vmem:[%s668 + $0x151] sm:$0xff]
      %v1593 = vld [vmem:[%s668 + $0x169] sm:$0xff]
      %v1594 = vld [vmem:[%s668 + $0x171] sm:$0xff]
      %v1595 = vld [vmem:[%s668 + $0x189] sm:$0xff]
      %v1596 = vld [vmem:[%s668 + $0x191] sm:$0xff]
      %v1597 = vld [vmem:[%s668 + $0x1a9] sm:$0xff]
      %v1598 = vld [vmem:[%s668 + $0x1b1] sm:$0xff]
      %v1599 = vld [vmem:[%s668 + $0x1c9] sm:$0xff]
      %v1600 = vld [vmem:[%s668 + $0x1d1] sm:$0xff]
      %v1601 = vld [vmem:[%s668 + $0x1e9] sm:$0xff]
      %v1602 = vld [vmem:[%s668 + $0x1f1] sm:$0xff]
      %s1603 = scalar_lea.vmem %s2, 20
      %v1604 = vld [vmem:[%s1603] sm:$0xf]
      %v1606 = vsel %vm595, %v1604, 0
      %v1609 = vsel %vm595, %v1571, 0
      %v1612 = vsel %vm595, %v1572, 0
      %v1615 = vsel %vm595, %v1573, 0
      %v1618 = vsel %vm595, %v1574, 0
      %v1621 = vsel %vm595, %v1575, 0
      %v1624 = vsel %vm595, %v1576, 0
      %v1627 = vsel %vm595, %v1577, 0
      %v1630 = vsel %vm595, %v1578, 0
      %v1633 = vsel %vm595, %v1579, 0
      %v1636 = vsel %vm595, %v1580, 0
      %v1639 = vsel %vm595, %v1581, 0
      %v1642 = vsel %vm595, %v1582, 0
      %v1645 = vsel %vm595, %v1583, 0
      %v1648 = vsel %vm595, %v1584, 0
      %v1651 = vsel %vm595, %v1585, 0
      %v1654 = vsel %vm595, %v1586, 0
      %v1657 = vsel %vm595, %v1587, 0
      %v1660 = vsel %vm595, %v1588, 0
      %v1663 = vsel %vm595, %v1589, 0
      %v1666 = vsel %vm595, %v1590, 0
      %v1669 = vsel %vm595, %v1591, 0
      %v1672 = vsel %vm595, %v1592, 0
      %v1675 = vsel %vm595, %v1593, 0
      %v1678 = vsel %vm595, %v1594, 0
      %v1681 = vsel %vm595, %v1595, 0
      %v1684 = vsel %vm595, %v1596, 0
      %v1687 = vsel %vm595, %v1597, 0
      %v1690 = vsel %vm595, %v1598, 0
      %v1693 = vsel %vm595, %v1599, 0
      %v1696 = vsel %vm595, %v1600, 0
      %v1699 = vsel %vm595, %v1601, 0
      %v1702 = vsel %vm595, %v1602, 0
      %1704 = vmatpush.xpose.msra.mxu0 %v1654
      %1705 = vmatpush.xpose.msra.mxu0 %v1651
      %1706 = vmatpush.xpose.msra.mxu0 %v1648
      %1707 = vmatpush.xpose.msra.mxu0 %v1645
      %1708 = vmatpush.xpose.msra.mxu0 %v1642
      %1709 = vmatpush.xpose.msra.mxu0 %v1639
      %1710 = vmatpush.xpose.msra.mxu0 %v1636
      %1711 = vmatpush.xpose.msra.mxu0 %v1633
      %1712 = vmatpush.xpose.msra.mxu0 %v1630
      %1713 = vmatpush.xpose.msra.mxu0 %v1627
      %1714 = vmatpush.xpose.msra.mxu0 %v1624
      %1715 = vmatpush.xpose.msra.mxu0 %v1621
      %1716 = vmatpush.xpose.msra.mxu0 %v1618
      %1717 = vmatpush.xpose.msra.mxu0 %v1615
      %1718 = vmatpush.xpose.msra.mxu0 %v1612
      %1719 = vmatpush.xpose.msra.mxu0 %v1609
      %1720 = vmatmul.f32.gmra.mxu0 %v1606
      %v1721 = vpop.f32.mrf.mxu0
      %v1722 = vadd.f32 0.0, %v1721
      %1723 = vdwg.mxu0
      %1724 = vmatpush.xpose.msra.mxu0 %v1702
      %1725 = vmatpush.xpose.msra.mxu0 %v1699
      %1726 = vmatpush.xpose.msra.mxu0 %v1696
      %1727 = vmatpush.xpose.msra.mxu0 %v1693
      %1728 = vmatpush.xpose.msra.mxu0 %v1690
      %1729 = vmatpush.xpose.msra.mxu0 %v1687
      %1730 = vmatpush.xpose.msra.mxu0 %v1684
      %1731 = vmatpush.xpose.msra.mxu0 %v1681
      %1732 = vmatpush.xpose.msra.mxu0 %v1678
      %1733 = vmatpush.xpose.msra.mxu0 %v1675
      %1734 = vmatpush.xpose.msra.mxu0 %v1672
      %1735 = vmatpush.xpose.msra.mxu0 %v1669
      %1736 = vmatpush.xpose.msra.mxu0 %v1666
      %1737 = vmatpush.xpose.msra.mxu0 %v1663
      %1738 = vmatpush.xpose.msra.mxu0 %v1660
      %1739 = vmatpush.xpose.msra.mxu0 %v1657
      %1740 = vmatmul.f32.gmra.mxu0 %v1606
      %v1741 = vpop.f32.mrf.mxu0
      %v1742 = vadd.f32 0.0, %v1741
      %1743 = vdwg.mxu0
      %v1744 = vadd.f32 %v1569, %v1722
      %v1745 = vadd.f32 %v1570, %v1742
      %s1746 = scalar_lea.vmem [#allocation2], 64
      %v1747 = vld [vmem:[%s1746 + $0x7] sm:$0xff]
      %v1748 = vld [vmem:[%s1746 + $0xf] sm:$0xff]
      %v1749 = vld [vmem:[%s1746 + $0x27] sm:$0xff]
      %v1750 = vld [vmem:[%s1746 + $0x2f] sm:$0xff]
      %v1751 = vld [vmem:[%s1746 + $0x47] sm:$0xff]
      %v1752 = vld [vmem:[%s1746 + $0x4f] sm:$0xff]
      %v1753 = vld [vmem:[%s1746 + $0x67] sm:$0xff]
      %v1754 = vld [vmem:[%s1746 + $0x6f] sm:$0xff]
      %v1755 = vld [vmem:[%s1746 + $0x87] sm:$0xff]
      %v1756 = vld [vmem:[%s1746 + $0x8f] sm:$0xff]
      %v1757 = vld [vmem:[%s1746 + $0xa7] sm:$0xff]
      %v1758 = vld [vmem:[%s1746 + $0xaf] sm:$0xff]
      %v1759 = vld [vmem:[%s1746 + $0xc7] sm:$0xff]
      %v1760 = vld [vmem:[%s1746 + $0xcf] sm:$0xff]
      %v1761 = vld [vmem:[%s1746 + $0xe7] sm:$0xff]
      %v1762 = vld [vmem:[%s1746 + $0xef] sm:$0xff]
      %v1763 = vld [vmem:[%s1746 + $0x107] sm:$0xff]
      %v1764 = vld [vmem:[%s1746 + $0x10f] sm:$0xff]
      %v1765 = vld [vmem:[%s1746 + $0x127] sm:$0xff]
      %v1766 = vld [vmem:[%s1746 + $0x12f] sm:$0xff]
      %v1767 = vld [vmem:[%s1746 + $0x147] sm:$0xff]
      %v1768 = vld [vmem:[%s1746 + $0x14f] sm:$0xff]
      %v1769 = vld [vmem:[%s1746 + $0x167] sm:$0xff]
      %v1770 = vld [vmem:[%s1746 + $0x16f] sm:$0xff]
      %v1771 = vld [vmem:[%s1746 + $0x187] sm:$0xff]
      %v1772 = vld [vmem:[%s1746 + $0x18f] sm:$0xff]
      %v1773 = vld [vmem:[%s1746 + $0x1a7] sm:$0xff]
      %v1774 = vld [vmem:[%s1746 + $0x1af] sm:$0xff]
      %v1775 = vld [vmem:[%s1746 + $0x1c7] sm:$0xff]
      %v1776 = vld [vmem:[%s1746 + $0x1cf] sm:$0xff]
      %v1777 = vld [vmem:[%s1746 + $0x1e7] sm:$0xff]
      %v1778 = vld [vmem:[%s1746 + $0x1ef] sm:$0xff]
      %s1779 = scalar_lea.vmem %s2, 24
      %v1780 = vld [vmem:[%s1779] sm:$0xf]
      %v1782 = vsel %vm595, %v1780, 0
      %v1785 = vsel %vm595, %v1747, 0
      %v1788 = vsel %vm595, %v1748, 0
      %v1791 = vsel %vm595, %v1749, 0
      %v1794 = vsel %vm595, %v1750, 0
      %v1797 = vsel %vm595, %v1751, 0
      %v1800 = vsel %vm595, %v1752, 0
      %v1803 = vsel %vm595, %v1753, 0
      %v1806 = vsel %vm595, %v1754, 0
      %v1809 = vsel %vm595, %v1755, 0
      %v1812 = vsel %vm595, %v1756, 0
      %v1815 = vsel %vm595, %v1757, 0
      %v1818 = vsel %vm595, %v1758, 0
      %v1821 = vsel %vm595, %v1759, 0
      %v1824 = vsel %vm595, %v1760, 0
      %v1827 = vsel %vm595, %v1761, 0
      %v1830 = vsel %vm595, %v1762, 0
      %v1833 = vsel %vm595, %v1763, 0
      %v1836 = vsel %vm595, %v1764, 0
      %v1839 = vsel %vm595, %v1765, 0
      %v1842 = vsel %vm595, %v1766, 0
      %v1845 = vsel %vm595, %v1767, 0
      %v1848 = vsel %vm595, %v1768, 0
      %v1851 = vsel %vm595, %v1769, 0
      %v1854 = vsel %vm595, %v1770, 0
      %v1857 = vsel %vm595, %v1771, 0
      %v1860 = vsel %vm595, %v1772, 0
      %v1863 = vsel %vm595, %v1773, 0
      %v1866 = vsel %vm595, %v1774, 0
      %v1869 = vsel %vm595, %v1775, 0
      %v1872 = vsel %vm595, %v1776, 0
      %v1875 = vsel %vm595, %v1777, 0
      %v1878 = vsel %vm595, %v1778, 0
      %1880 = vmatpush.xpose.msra.mxu0 %v1830
      %1881 = vmatpush.xpose.msra.mxu0 %v1827
      %1882 = vmatpush.xpose.msra.mxu0 %v1824
      %1883 = vmatpush.xpose.msra.mxu0 %v1821
      %1884 = vmatpush.xpose.msra.mxu0 %v1818
      %1885 = vmatpush.xpose.msra.mxu0 %v1815
      %1886 = vmatpush.xpose.msra.mxu0 %v1812
      %1887 = vmatpush.xpose.msra.mxu0 %v1809
      %1888 = vmatpush.xpose.msra.mxu0 %v1806
      %1889 = vmatpush.xpose.msra.mxu0 %v1803
      %1890 = vmatpush.xpose.msra.mxu0 %v1800
      %1891 = vmatpush.xpose.msra.mxu0 %v1797
      %1892 = vmatpush.xpose.msra.mxu0 %v1794
      %1893 = vmatpush.xpose.msra.mxu0 %v1791
      %1894 = vmatpush.xpose.msra.mxu0 %v1788
      %1895 = vmatpush.xpose.msra.mxu0 %v1785
      %1896 = vmatmul.f32.gmra.mxu0 %v1782
      %v1897 = vpop.f32.mrf.mxu0
      %v1898 = vadd.f32 0.0, %v1897
      %1899 = vdwg.mxu0
      %1900 = vmatpush.xpose.msra.mxu0 %v1878
      %1901 = vmatpush.xpose.msra.mxu0 %v1875
      %1902 = vmatpush.xpose.msra.mxu0 %v1872
      %1903 = vmatpush.xpose.msra.mxu0 %v1869
      %1904 = vmatpush.xpose.msra.mxu0 %v1866
      %1905 = vmatpush.xpose.msra.mxu0 %v1863
      %1906 = vmatpush.xpose.msra.mxu0 %v1860
      %1907 = vmatpush.xpose.msra.mxu0 %v1857
      %1908 = vmatpush.xpose.msra.mxu0 %v1854
      %1909 = vmatpush.xpose.msra.mxu0 %v1851
      %1910 = vmatpush.xpose.msra.mxu0 %v1848
      %1911 = vmatpush.xpose.msra.mxu0 %v1845
      %1912 = vmatpush.xpose.msra.mxu0 %v1842
      %1913 = vmatpush.xpose.msra.mxu0 %v1839
      %1914 = vmatpush.xpose.msra.mxu0 %v1836
      %1915 = vmatpush.xpose.msra.mxu0 %v1833
      %1916 = vmatmul.f32.gmra.mxu0 %v1782
      %v1917 = vpop.f32.mrf.mxu0
      %v1918 = vadd.f32 0.0, %v1917
      %1919 = vdwg.mxu0
      %v1920 = vadd.f32 %v1744, %v1898
      %v1921 = vadd.f32 %v1745, %v1918
      %v1922 = vld [vmem:[%s1746 + $0x8] sm:$0xff]
      %v1923 = vld [vmem:[%s1746 + $0x10] sm:$0xff]
      %v1924 = vld [vmem:[%s1746 + $0x28] sm:$0xff]
      %v1925 = vld [vmem:[%s1746 + $0x30] sm:$0xff]
      %v1926 = vld [vmem:[%s1746 + $0x48] sm:$0xff]
      %v1927 = vld [vmem:[%s1746 + $0x50] sm:$0xff]
      %v1928 = vld [vmem:[%s1746 + $0x68] sm:$0xff]
      %v1929 = vld [vmem:[%s1746 + $0x70] sm:$0xff]
      %v1930 = vld [vmem:[%s1746 + $0x88] sm:$0xff]
      %v1931 = vld [vmem:[%s1746 + $0x90] sm:$0xff]
      %v1932 = vld [vmem:[%s1746 + $0xa8] sm:$0xff]
      %v1933 = vld [vmem:[%s1746 + $0xb0] sm:$0xff]
      %v1934 = vld [vmem:[%s1746 + $0xc8] sm:$0xff]
      %v1935 = vld [vmem:[%s1746 + $0xd0] sm:$0xff]
      %v1936 = vld [vmem:[%s1746 + $0xe8] sm:$0xff]
      %v1937 = vld [vmem:[%s1746 + $0xf0] sm:$0xff]
      %v1938 = vld [vmem:[%s1746 + $0x108] sm:$0xff]
      %v1939 = vld [vmem:[%s1746 + $0x110] sm:$0xff]
      %v1940 = vld [vmem:[%s1746 + $0x128] sm:$0xff]
      %v1941 = vld [vmem:[%s1746 + $0x130] sm:$0xff]
      %v1942 = vld [vmem:[%s1746 + $0x148] sm:$0xff]
      %v1943 = vld [vmem:[%s1746 + $0x150] sm:$0xff]
      %v1944 = vld [vmem:[%s1746 + $0x168] sm:$0xff]
      %v1945 = vld [vmem:[%s1746 + $0x170] sm:$0xff]
      %v1946 = vld [vmem:[%s1746 + $0x188] sm:$0xff]
      %v1947 = vld [vmem:[%s1746 + $0x190] sm:$0xff]
      %v1948 = vld [vmem:[%s1746 + $0x1a8] sm:$0xff]
      %v1949 = vld [vmem:[%s1746 + $0x1b0] sm:$0xff]
      %v1950 = vld [vmem:[%s1746 + $0x1c8] sm:$0xff]
      %v1951 = vld [vmem:[%s1746 + $0x1d0] sm:$0xff]
      %v1952 = vld [vmem:[%s1746 + $0x1e8] sm:$0xff]
      %v1953 = vld [vmem:[%s1746 + $0x1f0] sm:$0xff]
      %s1954 = scalar_lea.vmem %s2, 28
      %v1955 = vld [vmem:[%s1954] sm:$0xf]
      %v1957 = vsel %vm595, %v1955, 0
      %v1960 = vsel %vm595, %v1922, 0
      %v1963 = vsel %vm595, %v1923, 0
      %v1966 = vsel %vm595, %v1924, 0
      %v1969 = vsel %vm595, %v1925, 0
      %v1972 = vsel %vm595, %v1926, 0
      %v1975 = vsel %vm595, %v1927, 0
      %v1978 = vsel %vm595, %v1928, 0
      %v1981 = vsel %vm595, %v1929, 0
      %v1984 = vsel %vm595, %v1930, 0
      %v1987 = vsel %vm595, %v1931, 0
      %v1990 = vsel %vm595, %v1932, 0
      %v1993 = vsel %vm595, %v1933, 0
      %v1996 = vsel %vm595, %v1934, 0
      %v1999 = vsel %vm595, %v1935, 0
      %v2002 = vsel %vm595, %v1936, 0
      %v2005 = vsel %vm595, %v1937, 0
      %v2008 = vsel %vm595, %v1938, 0
      %v2011 = vsel %vm595, %v1939, 0
      %v2014 = vsel %vm595, %v1940, 0
      %v2017 = vsel %vm595, %v1941, 0
      %v2020 = vsel %vm595, %v1942, 0
      %v2023 = vsel %vm595, %v1943, 0
      %v2026 = vsel %vm595, %v1944, 0
      %v2029 = vsel %vm595, %v1945, 0
      %v2032 = vsel %vm595, %v1946, 0
      %v2035 = vsel %vm595, %v1947, 0
      %v2038 = vsel %vm595, %v1948, 0
      %v2041 = vsel %vm595, %v1949, 0
      %v2044 = vsel %vm595, %v1950, 0
      %v2047 = vsel %vm595, %v1951, 0
      %v2050 = vsel %vm595, %v1952, 0
      %v2053 = vsel %vm595, %v1953, 0
      %2055 = vmatpush.xpose.msra.mxu0 %v2005
      %2056 = vmatpush.xpose.msra.mxu0 %v2002
      %2057 = vmatpush.xpose.msra.mxu0 %v1999
      %2058 = vmatpush.xpose.msra.mxu0 %v1996
      %2059 = vmatpush.xpose.msra.mxu0 %v1993
      %2060 = vmatpush.xpose.msra.mxu0 %v1990
      %2061 = vmatpush.xpose.msra.mxu0 %v1987
      %2062 = vmatpush.xpose.msra.mxu0 %v1984
      %2063 = vmatpush.xpose.msra.mxu0 %v1981
      %2064 = vmatpush.xpose.msra.mxu0 %v1978
      %2065 = vmatpush.xpose.msra.mxu0 %v1975
      %2066 = vmatpush.xpose.msra.mxu0 %v1972
      %2067 = vmatpush.xpose.msra.mxu0 %v1969
      %2068 = vmatpush.xpose.msra.mxu0 %v1966
      %2069 = vmatpush.xpose.msra.mxu0 %v1963
      %2070 = vmatpush.xpose.msra.mxu0 %v1960
      %2071 = vmatmul.f32.gmra.mxu0 %v1957
      %v2072 = vpop.f32.mrf.mxu0
      %v2073 = vadd.f32 0.0, %v2072
      %2074 = vdwg.mxu0
      %2075 = vmatpush.xpose.msra.mxu0 %v2053
      %2076 = vmatpush.xpose.msra.mxu0 %v2050
      %2077 = vmatpush.xpose.msra.mxu0 %v2047
      %2078 = vmatpush.xpose.msra.mxu0 %v2044
      %2079 = vmatpush.xpose.msra.mxu0 %v2041
      %2080 = vmatpush.xpose.msra.mxu0 %v2038
      %2081 = vmatpush.xpose.msra.mxu0 %v2035
      %2082 = vmatpush.xpose.msra.mxu0 %v2032
      %2083 = vmatpush.xpose.msra.mxu0 %v2029
      %2084 = vmatpush.xpose.msra.mxu0 %v2026
      %2085 = vmatpush.xpose.msra.mxu0 %v2023
      %2086 = vmatpush.xpose.msra.mxu0 %v2020
      %2087 = vmatpush.xpose.msra.mxu0 %v2017
      %2088 = vmatpush.xpose.msra.mxu0 %v2014
      %2089 = vmatpush.xpose.msra.mxu0 %v2011
      %2090 = vmatpush.xpose.msra.mxu0 %v2008
      %2091 = vmatmul.f32.gmra.mxu0 %v1957
      %v2092 = vpop.f32.mrf.mxu0
      %v2093 = vadd.f32 0.0, %v2092
      %2094 = vdwg.mxu0
      %v2095 = vadd.f32 %v1920, %v2073
      %v2096 = vadd.f32 %v1921, %v2093
      %v2097 = vld [vmem:[%s1746 + $0x9] sm:$0xff]
      %v2098 = vld [vmem:[%s1746 + $0x11] sm:$0xff]
      %v2099 = vld [vmem:[%s1746 + $0x29] sm:$0xff]
      %v2100 = vld [vmem:[%s1746 + $0x31] sm:$0xff]
      %v2101 = vld [vmem:[%s1746 + $0x49] sm:$0xff]
      %v2102 = vld [vmem:[%s1746 + $0x51] sm:$0xff]
      %v2103 = vld [vmem:[%s1746 + $0x69] sm:$0xff]
      %v2104 = vld [vmem:[%s1746 + $0x71] sm:$0xff]
      %v2105 = vld [vmem:[%s1746 + $0x89] sm:$0xff]
      %v2106 = vld [vmem:[%s1746 + $0x91] sm:$0xff]
      %v2107 = vld [vmem:[%s1746 + $0xa9] sm:$0xff]
      %v2108 = vld [vmem:[%s1746 + $0xb1] sm:$0xff]
      %v2109 = vld [vmem:[%s1746 + $0xc9] sm:$0xff]
      %v2110 = vld [vmem:[%s1746 + $0xd1] sm:$0xff]
      %v2111 = vld [vmem:[%s1746 + $0xe9] sm:$0xff]
      %v2112 = vld [vmem:[%s1746 + $0xf1] sm:$0xff]
      %v2113 = vld [vmem:[%s1746 + $0x109] sm:$0xff]
      %v2114 = vld [vmem:[%s1746 + $0x111] sm:$0xff]
      %v2115 = vld [vmem:[%s1746 + $0x129] sm:$0xff]
      %v2116 = vld [vmem:[%s1746 + $0x131] sm:$0xff]
      %v2117 = vld [vmem:[%s1746 + $0x149] sm:$0xff]
      %v2118 = vld [vmem:[%s1746 + $0x151] sm:$0xff]
      %v2119 = vld [vmem:[%s1746 + $0x169] sm:$0xff]
      %v2120 = vld [vmem:[%s1746 + $0x171] sm:$0xff]
      %v2121 = vld [vmem:[%s1746 + $0x189] sm:$0xff]
      %v2122 = vld [vmem:[%s1746 + $0x191] sm:$0xff]
      %v2123 = vld [vmem:[%s1746 + $0x1a9] sm:$0xff]
      %v2124 = vld [vmem:[%s1746 + $0x1b1] sm:$0xff]
      %v2125 = vld [vmem:[%s1746 + $0x1c9] sm:$0xff]
      %v2126 = vld [vmem:[%s1746 + $0x1d1] sm:$0xff]
      %v2127 = vld [vmem:[%s1746 + $0x1e9] sm:$0xff]
      %v2128 = vld [vmem:[%s1746 + $0x1f1] sm:$0xff]
      %s2129 = scalar_lea.vmem %s2, 32
      %v2130 = vld [vmem:[%s2129] sm:$0xf]
      %v2132 = vsel %vm595, %v2130, 0
      %v2135 = vsel %vm595, %v2097, 0
      %v2138 = vsel %vm595, %v2098, 0
      %v2141 = vsel %vm595, %v2099, 0
      %v2144 = vsel %vm595, %v2100, 0
      %v2147 = vsel %vm595, %v2101, 0
      %v2150 = vsel %vm595, %v2102, 0
      %v2153 = vsel %vm595, %v2103, 0
      %v2156 = vsel %vm595, %v2104, 0
      %v2159 = vsel %vm595, %v2105, 0
      %v2162 = vsel %vm595, %v2106, 0
      %v2165 = vsel %vm595, %v2107, 0
      %v2168 = vsel %vm595, %v2108, 0
      %v2171 = vsel %vm595, %v2109, 0
      %v2174 = vsel %vm595, %v2110, 0
      %v2177 = vsel %vm595, %v2111, 0
      %v2180 = vsel %vm595, %v2112, 0
      %v2183 = vsel %vm595, %v2113, 0
      %v2186 = vsel %vm595, %v2114, 0
      %v2189 = vsel %vm595, %v2115, 0
      %v2192 = vsel %vm595, %v2116, 0
      %v2195 = vsel %vm595, %v2117, 0
      %v2198 = vsel %vm595, %v2118, 0
      %v2201 = vsel %vm595, %v2119, 0
      %v2204 = vsel %vm595, %v2120, 0
      %v2207 = vsel %vm595, %v2121, 0
      %v2210 = vsel %vm595, %v2122, 0
      %v2213 = vsel %vm595, %v2123, 0
      %v2216 = vsel %vm595, %v2124, 0
      %v2219 = vsel %vm595, %v2125, 0
      %v2222 = vsel %vm595, %v2126, 0
      %v2225 = vsel %vm595, %v2127, 0
      %v2228 = vsel %vm595, %v2128, 0
      %2230 = vmatpush.xpose.msra.mxu0 %v2180
      %2231 = vmatpush.xpose.msra.mxu0 %v2177
      %2232 = vmatpush.xpose.msra.mxu0 %v2174
      %2233 = vmatpush.xpose.msra.mxu0 %v2171
      %2234 = vmatpush.xpose.msra.mxu0 %v2168
      %2235 = vmatpush.xpose.msra.mxu0 %v2165
      %2236 = vmatpush.xpose.msra.mxu0 %v2162
      %2237 = vmatpush.xpose.msra.mxu0 %v2159
      %2238 = vmatpush.xpose.msra.mxu0 %v2156
      %2239 = vmatpush.xpose.msra.mxu0 %v2153
      %2240 = vmatpush.xpose.msra.mxu0 %v2150
      %2241 = vmatpush.xpose.msra.mxu0 %v2147
      %2242 = vmatpush.xpose.msra.mxu0 %v2144
      %2243 = vmatpush.xpose.msra.mxu0 %v2141
      %2244 = vmatpush.xpose.msra.mxu0 %v2138
      %2245 = vmatpush.xpose.msra.mxu0 %v2135
      %2246 = vmatmul.f32.gmra.mxu0 %v2132
      %v2247 = vpop.f32.mrf.mxu0
      %v2248 = vadd.f32 0.0, %v2247
      %2249 = vdwg.mxu0
      %2250 = vmatpush.xpose.msra.mxu0 %v2228
      %2251 = vmatpush.xpose.msra.mxu0 %v2225
      %2252 = vmatpush.xpose.msra.mxu0 %v2222
      %2253 = vmatpush.xpose.msra.mxu0 %v2219
      %2254 = vmatpush.xpose.msra.mxu0 %v2216
      %2255 = vmatpush.xpose.msra.mxu0 %v2213
      %2256 = vmatpush.xpose.msra.mxu0 %v2210
      %2257 = vmatpush.xpose.msra.mxu0 %v2207
      %2258 = vmatpush.xpose.msra.mxu0 %v2204
      %2259 = vmatpush.xpose.msra.mxu0 %v2201
      %2260 = vmatpush.xpose.msra.mxu0 %v2198
      %2261 = vmatpush.xpose.msra.mxu0 %v2195
      %2262 = vmatpush.xpose.msra.mxu0 %v2192
      %2263 = vmatpush.xpose.msra.mxu0 %v2189
      %2264 = vmatpush.xpose.msra.mxu0 %v2186
      %2265 = vmatpush.xpose.msra.mxu0 %v2183
      %2266 = vmatmul.f32.gmra.mxu0 %v2132
      %v2267 = vpop.f32.mrf.mxu0
      %v2268 = vadd.f32 0.0, %v2267
      %2269 = vdwg.mxu0
      %v2270 = vadd.f32 %v2095, %v2248
      %v2271 = vadd.f32 %v2096, %v2268
      %v2272 = vld [vmem:[%s5] sm:$0xf]
      %2274 = vset.pattern.permute.xlu0 0
      %2275 = vperm.xlu0 %2274, %v2272
      %v2276 = vpop.permute.xlu0 %2275
      %v2278 = vadd.f32 %v2270, %v2276
      %v2279 = vadd.f32 %v2271, %v2276
      %v2280 = vmax.f32 %v2278, 0.0
      %v2281 = vmax.f32 %v2279, 0.0
      %v2282 = vld [vmem:[%s3] sm:$0xff]
      %v2283 = vld [vmem:[%s3 + $0x8] sm:$0xff]
      %v2284 = vld [vmem:[%s6] sm:$0xff]
      %v2285 = vld [vmem:[%s6 + $0x8] sm:$0xff]
      %2287 = vset.pattern.permute.xlu0 0
      %2288 = vperm.xlu0 %2287, %v2284
      %v2289 = vpop.permute.xlu0 %2288
      %2292 = vset.pattern.permute.xlu0 0
      %2293 = vperm.xlu0 %2292, %v2285
      %v2294 = vpop.permute.xlu0 %2293
      %v2297 = vsel %vm595, %v2282, 0
      %v2300 = vsel %vm595, %v2283, 0
      %vm2302 = vcmask 1043456
      %v2304 = vsel %vm2302, %v2280, 0
      %v2307 = vsel %vm2302, %v2281, 0
      %2309 = vmatpush.msra.mxu0 0.0
      %2310 = vmatpush.msra.mxu0 0.0
      %2311 = vmatpush.msra.mxu0 0.0
      %2312 = vmatpush.msra.mxu0 0.0
      %2313 = vmatpush.msra.mxu0 0.0
      %2314 = vmatpush.msra.mxu0 0.0
      %2315 = vmatpush.msra.mxu0 0.0
      %2316 = vmatpush.msra.mxu0 0.0
      %2317 = vmatpush.msra.mxu0 0.0
      %2318 = vmatpush.msra.mxu0 0.0
      %2319 = vmatpush.msra.mxu0 0.0
      %2320 = vmatpush.msra.mxu0 0.0
      %2321 = vmatpush.msra.mxu0 0.0
      %2322 = vmatpush.msra.mxu0 0.0
      %2323 = vmatpush.msra.mxu0 0.0
      %2324 = vmatpush.msra.mxu0 %v2304
      %2325 = vmatmul.f32.gmra.mxu0 %v2297
      %v2326 = vpop.f32.mrf.mxu0
      %v2327 = vadd.f32 %v2289, %v2326
      %2328 = vmatmul.f32.gmra.mxu0 %v2300
      %v2329 = vpop.f32.mrf.mxu0
      %v2330 = vadd.f32 %v2294, %v2329
      %2331 = vdwg.mxu0
      %2332 = vmatpush.msra.mxu0 0.0
      %2333 = vmatpush.msra.mxu0 0.0
      %2334 = vmatpush.msra.mxu0 0.0
      %2335 = vmatpush.msra.mxu0 0.0
      %2336 = vmatpush.msra.mxu0 0.0
      %2337 = vmatpush.msra.mxu0 0.0
      %2338 = vmatpush.msra.mxu0 0.0
      %2339 = vmatpush.msra.mxu0 0.0
      %2340 = vmatpush.msra.mxu0 0.0
      %2341 = vmatpush.msra.mxu0 0.0
      %2342 = vmatpush.msra.mxu0 0.0
      %2343 = vmatpush.msra.mxu0 0.0
      %2344 = vmatpush.msra.mxu0 0.0
      %2345 = vmatpush.msra.mxu0 0.0
      %2346 = vmatpush.msra.mxu0 0.0
      %2347 = vmatpush.msra.mxu0 %v2307
      %2348 = vmatmul.f32.gmra.mxu0 %v2297
      %v2349 = vpop.f32.mrf.mxu0
      %v2350 = vadd.f32 %v2289, %v2349
      %2351 = vmatmul.f32.gmra.mxu0 %v2300
      %v2352 = vpop.f32.mrf.mxu0
      %v2353 = vadd.f32 %v2294, %v2352
      %2354 = vdwg.mxu0
      %v2355 = vadd.f32 %v2327, %v279
      %v2356 = vadd.f32 %v2350, %v280
      %v2357 = vadd.f32 %v2330, %v281
      %v2358 = vadd.f32 %v2353, %v282
      %v2359 = vmax.f32 %v2355, 0.0
      %v2360 = vmax.f32 %v2356, 0.0
      %v2361 = vmax.f32 %v2357, 0.0
      %v2362 = vmax.f32 %v2358, 0.0
      %2363 = vst [vmem:[%s278] sm:$0xff] %v2359
      %2364 = vst [vmem:[%s278 + $0x8] sm:$0xff] %v2360
      %2365 = vst [vmem:[%s278 + $0x10] sm:$0xff] %v2361
      %2366 = vst [vmem:[%s278 + $0x18] sm:$0xff] %v2362
      %p2367 = scmp.lt.s32.totalorder %s18, 1
      %s2368 = scalar_select %p2367, %s18, 1
      %s2369 = smul.addr %s2368, 4
      %s2370 = smul.addr %s2369, 8
      %s2371 = scalar_lea.vmem %s7, %s2370
      // Predicated region
      $region49: #{bottleneck_forward.1} parent=47 // pred_check
        %p2372 = pneg %p188
      $region50: #{bottleneck_forward.1} parent=47 // pred_check_branch
        %2374 = sbr.rel (%p2372) target = $region52
      $region51: #{bottleneck_forward.1} parent=47 // pred_region
        _
      $region52: #{bottleneck_forward.1} parent=47 // pred_fallthru
        _
    $region48: #{bottleneck_forward.1} parent=5 // pred_fallthru
      _
    %p2375 = scmp.le.s32.totalorder 2, %s13
    // Predicated region
    $region53: #{bottleneck_forward.1} parent=5 // pred_check
      %p2376 = pneg %p2375
    $region54: #{bottleneck_forward.1} parent=5 // pred_check_branch
      %2378 = sbr.rel (%p2376) target = $region56
    $region55: #{bottleneck_forward.1} parent=5 // pred_region
      %s2379 = ssub.s32 %s13, 2
      // Predicated region
      $region57: #{bottleneck_forward.1} parent=55 // pred_check
        %p2380 = pneg %p194
      $region58: #{bottleneck_forward.1} parent=55 // pred_check_branch
        %2382 = sbr.rel (%p2380) target = $region60
      $region59: #{bottleneck_forward.1} parent=55 // pred_region
        %p2383 = scmp.lt.s32.totalorder %s19, 1
        %s2384 = scalar_select %p2383, %s19, 1
        %s2385 = smul.addr %s2384, 4
        %s2386 = smul.addr %s2385, 8
        %s2387 = scalar_lea.vmem %s7, %s2386
      $region60: #{bottleneck_forward.1} parent=55 // pred_fallthru
        _
    $region56: #{bottleneck_forward.1} parent=5 // pred_fallthru
      _
  $region6: #{bottleneck_forward.1} parent=0 // loop_footer
    %s17 = sadd.s32 1, %s13
  $region7: #{bottleneck_forward.1} parent=0 // loop_footer_branch
    %12 = sbr.rel target = $region3
  $region8: #{bottleneck_forward.1} parent=0 // loop_exit
    _

</llo_original>
